<compile_context>
chip_gen: v6e
topology: v6e:2x2x1
jax: 0.10.0
libtpu: 0.0.40
codegen_flags: <defaults>
</compile_context>

<pallas_src>
import functools
import math

import jax
import jax.numpy as jnp
from jax.experimental import pallas as pl
from jax.experimental.pallas import tpu as pltpu


def _round_up(x, m):
    return (x + m - 1) // m * m


def _lane_fold(R, C):
    """Fold rows into lanes when C < 128 so elementwise stores are lane-dense."""
    if C < 128 and 128 % C == 0 and R % (128 // C) == 0:
        return 128 // C
    return 1


_VMEM_LIMIT = 32 * 1024 * 1024      # raises v5e's 16MiB default, matches v6e/v7x defaults


# ----------------------------- Pallas kernels -----------------------------

def _mm_fused_kernel(*refs, relu, has_scale, has_bias, has_res):
    """bf16 matmul with f32 accumulation; finalize fuses scale/bias/residual/ReLU."""
    a_ref, b_ref = refs[0], refs[1]
    idx = 2
    s_ref = c_ref = r_ref = None
    if has_scale:
        s_ref = refs[idx]; idx += 1
    if has_bias:
        c_ref = refs[idx]; idx += 1
    if has_res:
        r_ref = refs[idx]; idx += 1
    o_ref = refs[idx]
    acc_ref = refs[idx + 1]

    @pl.when(pl.program_id(2) == 0)
    def _():
        acc_ref[...] = jnp.zeros_like(acc_ref)

    acc_ref[...] += jnp.dot(a_ref[...], b_ref[...],
                            preferred_element_type=jnp.float32)

    @pl.when(pl.program_id(2) == pl.num_programs(2) - 1)
    def _():
        y = acc_ref[...]
        if has_scale:
            y = y * s_ref[...]
        if has_bias:
            y = y + c_ref[...]
        if has_res:
            y = y + r_ref[...].astype(jnp.float32)
        if relu:
            y = jnp.maximum(y, 0.0)
        o_ref[...] = y.astype(o_ref.dtype)


def _pick_k_tile(K):
    Kp = _round_up(K, 128)
    for cand in (512, 384, 256, 128):
        if Kp % cand == 0:
            return cand, Kp
    return 128, Kp


@functools.partial(jax.jit, static_argnames=("relu", "out_dtype"))
def matmul_fused(a, b, scale=None, bias=None, residual=None, *,
                 relu=False, out_dtype=jnp.float32):
    """(M,K)@(K,N) on the MXU in bf16 with f32 accumulation.
    Optional fused epilogue: y = [relu](acc * scale + bias + residual)."""
    M, K = a.shape
    K2, N = b.shape
    assert K == K2
    a = a.astype(jnp.bfloat16)
    b = b.astype(jnp.bfloat16)

    # Tile selection: large 256/512-class tiles aligned to the 256-wide MXU.
    if M >= 3584:
        tm = 512
    elif M >= 1024:
        tm = 256
    else:
        tm = _round_up(M, 16)
    Mp = _round_up(M, tm)
    tk, Kp = _pick_k_tile(K)
    Np = _round_up(N, 128)
    tn = 256 if Np % 256 == 0 else 128

    ap = jnp.pad(a, ((0, Mp - M), (0, Kp - K)))
    bp = jnp.pad(b, ((0, Kp - K), (0, Np - N)))

    has_scale = scale is not None
    has_bias = bias is not None
    has_res = residual is not None

    in_specs = [pl.BlockSpec((tm, tk), lambda i, j, k: (i, k)),
                pl.BlockSpec((tk, tn), lambda i, j, k: (k, j))]
    args = [ap, bp]
    vec_spec = pl.BlockSpec((1, tn), lambda i, j, k: (0, j))
    if has_scale:
        args.append(jnp.pad(jnp.asarray(scale, jnp.float32).reshape(1, N),
                            ((0, 0), (0, Np - N))))
        in_specs.append(vec_spec)
    if has_bias:
        args.append(jnp.pad(jnp.asarray(bias, jnp.float32).reshape(1, N),
                            ((0, 0), (0, Np - N))))
        in_specs.append(vec_spec)
    if has_res:
        args.append(jnp.pad(residual, ((0, Mp - M), (0, Np - N))))
        in_specs.append(pl.BlockSpec((tm, tn), lambda i, j, k: (i, j)))

    kern = functools.partial(_mm_fused_kernel, relu=relu, has_scale=has_scale,
                             has_bias=has_bias, has_res=has_res)
    out = pl.pallas_call(
        kern,
        out_shape=jax.ShapeDtypeStruct((Mp, Np), out_dtype),
        grid_spec=pltpu.PrefetchScalarGridSpec(
            num_scalar_prefetch=0,
            grid=(Mp // tm, Np // tn, Kp // tk),
            in_specs=in_specs,
            out_specs=pl.BlockSpec((tm, tn), lambda i, j, k: (i, j)),
            scratch_shapes=[pltpu.VMEM((tm, tn), jnp.float32)]),
        compiler_params=pltpu.CompilerParams(
            dimension_semantics=("parallel", "parallel", "arbitrary"),
            vmem_limit_bytes=_VMEM_LIMIT),
    )(*args)
    return out[:M, :N]


def _affine_kernel(x_ref, s_ref, b_ref, o_ref, *, relu):
    y = x_ref[...].astype(jnp.float32) * s_ref[...] + b_ref[...]
    if relu:
        y = jnp.maximum(y, 0.0)
    o_ref[...] = y.astype(o_ref.dtype)


def _affine_res_kernel(x_ref, s_ref, b_ref, r_ref, o_ref, *, relu):
    y = (x_ref[...].astype(jnp.float32) * s_ref[...] + b_ref[...]
         + r_ref[...].astype(jnp.float32))
    if relu:
        y = jnp.maximum(y, 0.0)
    o_ref[...] = y.astype(o_ref.dtype)


@functools.partial(jax.jit, static_argnames=("relu",))
def affine_act(x, scale, bias, residual=None, *, relu=True):
    """y = [relu](x * scale + bias [+ residual]); x:(R,C), scale/bias:(C,).
    Lane-folds C<128 so stores are 128-lane dense; f32 math, output in x.dtype."""
    R, C = x.shape
    fold = _lane_fold(R, C)
    Cf, Rf = C * fold, R // fold
    xf = x.reshape(Rf, Cf)
    s = jnp.tile(jnp.asarray(scale, jnp.float32), fold).reshape(1, Cf)
    b = jnp.tile(jnp.asarray(bias, jnp.float32), fold).reshape(1, Cf)
    tile_r = min(256, _round_up(Rf, 16))
    Rp = _round_up(Rf, tile_r)
    xp = jnp.pad(xf, ((0, Rp - Rf), (0, 0)))
    row_spec = pl.BlockSpec((tile_r, Cf), lambda i: (i, 0))
    vec_spec = pl.BlockSpec((1, Cf), lambda i: (0, 0))
    if residual is None:
        kern = functools.partial(_affine_kernel, relu=relu)
        in_specs = [row_spec, vec_spec, vec_spec]
        args = (xp, s, b)
    else:
        rp = jnp.pad(residual.reshape(Rf, Cf), ((0, Rp - Rf), (0, 0)))
        kern = functools.partial(_affine_res_kernel, relu=relu)
        in_specs = [row_spec, vec_spec, vec_spec, row_spec]
        args = (xp, s, b, rp)
    out = pl.pallas_call(
        kern,
        out_shape=jax.ShapeDtypeStruct((Rp, Cf), x.dtype),
        grid=(Rp // tile_r,),
        in_specs=in_specs,
        out_specs=row_spec,
        compiler_params=pltpu.CompilerParams(dimension_semantics=("parallel",)),
    )(*args)
    return out[:Rf].reshape(R, C)


def _stats_kernel(x_ref, sum_ref, ssq_ref):
    @pl.when(pl.program_id(0) == 0)
    def _():
        sum_ref[...] = jnp.zeros_like(sum_ref)
        ssq_ref[...] = jnp.zeros_like(ssq_ref)
    x = x_ref[...].astype(jnp.float32)
    sum_ref[...] += jnp.sum(x, axis=0, keepdims=True)
    ssq_ref[...] += jnp.sum(x * x, axis=0, keepdims=True)


@jax.jit
def batch_stats(x2):
    """Per-channel (biased) mean/var in one Pallas pass; f32 accumulation."""
    R, C = x2.shape
    fold = _lane_fold(R, C)
    Cf, Rf = C * fold, R // fold
    xf = x2.reshape(Rf, Cf)
    tile_r = min(512, _round_up(Rf, 16))
    Rp = _round_up(Rf, tile_r)
    xp = jnp.pad(xf, ((0, Rp - Rf), (0, 0)))          # zero pad: contributes 0 to sums
    s, ss = pl.pallas_call(
        _stats_kernel,
        out_shape=(jax.ShapeDtypeStruct((1, Cf), jnp.float32),
                   jax.ShapeDtypeStruct((1, Cf), jnp.float32)),
        grid=(Rp // tile_r,),
        in_specs=[pl.BlockSpec((tile_r, Cf), lambda i: (i, 0))],
        out_specs=(pl.BlockSpec((1, Cf), lambda i: (0, 0)),
                   pl.BlockSpec((1, Cf), lambda i: (0, 0))),
        compiler_params=pltpu.CompilerParams(dimension_semantics=("arbitrary",)),
    )(xp)
    s = s.reshape(fold, C).sum(axis=0)
    ss = ss.reshape(fold, C).sum(axis=0)
    mean = s / R
    var = jnp.maximum(ss / R - mean * mean, 0.0)
    return mean, var


def _window_max_kernel(x_ref, o_ref):
    y = x_ref[0].astype(jnp.float32)
    for t in range(1, x_ref.shape[0]):
        y = jnp.maximum(y, x_ref[t].astype(jnp.float32))
    o_ref[...] = y.astype(o_ref.dtype)


@jax.jit
def maxpool_3x3_s2_p1(x):
    """MaxPool2d(kernel=3, stride=2, padding=1) on NHWC via Pallas 9-way max."""
    N, H, W, C = x.shape
    xp = jnp.pad(x, ((0, 0), (1, 1), (1, 1), (0, 0)), constant_values=-jnp.inf)
    Ho = (H + 2 - 3) // 2 + 1
    Wo = (W + 2 - 3) // 2 + 1
    wins = [xp[:, i:i + 2 * (Ho - 1) + 1:2, j:j + 2 * (Wo - 1) + 1:2, :]
            for i in range(3) for j in range(3)]
    R = N * Ho * Wo
    stk = jnp.stack(wins, axis=0).reshape(9, R, C)
    fold = _lane_fold(R, C)
    Cf, Rf = C * fold, R // fold
    stk = stk.reshape(9, Rf, Cf)
    tile_r = min(512, _round_up(Rf, 16))
    Rp = _round_up(Rf, tile_r)
    stk = jnp.pad(stk, ((0, 0), (0, Rp - Rf), (0, 0)), constant_values=-jnp.inf)
    out = pl.pallas_call(
        _window_max_kernel,
        out_shape=jax.ShapeDtypeStruct((Rp, Cf), x.dtype),
        grid=(Rp // tile_r,),
        in_specs=[pl.BlockSpec((9, tile_r, Cf), lambda i: (0, i, 0))],
        out_specs=pl.BlockSpec((tile_r, Cf), lambda i: (i, 0)),
        compiler_params=pltpu.CompilerParams(dimension_semantics=("parallel",)),
    )(stk)
    return out[:Rf].reshape(N, Ho, Wo, C)


# ----------------------------- layers (glue around the kernels) -----------------------------

@functools.partial(jax.jit, static_argnames=("stride", "pad", "relu", "out_dtype"))
def conv2d_fused(x, w, scale=None, bias=None, residual=None, *,
                 stride=1, pad=0, relu=False, out_dtype=jnp.bfloat16):
    """x:(N,H,W,Cin) bf16, w:(kh,kw,Cin,Cout) bf16. im2col + Pallas matmul with a
    fused scale/bias/residual/ReLU epilogue (no separate activation roundtrip)."""
    N, H, W, Cin = x.shape
    kh, kw, _, Cout = w.shape
    x = x.astype(jnp.bfloat16)
    xp = jnp.pad(x, ((0, 0), (pad, pad), (pad, pad), (0, 0)))
    Ho = (H + 2 * pad - kh) // stride + 1
    Wo = (W + 2 * pad - kw) // stride + 1
    cols = [xp[:, i:i + (Ho - 1) * stride + 1:stride,
               j:j + (Wo - 1) * stride + 1:stride, :]
            for i in range(kh) for j in range(kw)]
    patches = jnp.concatenate(cols, axis=-1).reshape(N * Ho * Wo, kh * kw * Cin)
    res2 = None if residual is None else residual.reshape(N * Ho * Wo, Cout)
    y = matmul_fused(patches, w.reshape(kh * kw * Cin, Cout),
                     scale, bias, res2, relu=relu, out_dtype=out_dtype)
    return y.reshape(N, Ho, Wo, Cout)


def _bn_scale_shift(bn, eps=1e-5):
    scale = bn['gamma'] * jax.lax.rsqrt(bn['var'] + eps)
    shift = bn['beta'] - bn['mean'] * scale
    return scale, shift


def batchnorm_act(x, bn, *, relu=True, residual=None, training=True, eps=1e-5):
    """BatchNorm2d (+ optional residual add) (+ optional ReLU), fused in Pallas.
    Training mode uses biased batch stats from a one-pass Pallas reduction."""
    N, H, W, C = x.shape
    x2 = x.reshape(N * H * W, C)
    if training:
        mean, var = batch_stats(x2)
    else:
        mean, var = bn['mean'], bn['var']
    scale = bn['gamma'] * jax.lax.rsqrt(var + eps)
    shift = bn['beta'] - mean * scale
    r2 = None if residual is None else residual.reshape(N * H * W, C)
    y = affine_act(x2, scale, shift, r2, relu=relu)
    return y.reshape(N, H, W, C)


def conv_bias_act(x, p, *, relu=True, out_dtype=jnp.bfloat16):
    return conv2d_fused(x, p['w'], None, p['b'], stride=1, pad=1,
                        relu=relu, out_dtype=out_dtype)


def linear(x, p, *, relu=False, out_dtype=jnp.float32):
    return matmul_fused(x, p['w'], None, p['b'], relu=relu, out_dtype=out_dtype)


def upsample_nearest(x, s):
    N, H, W, C = x.shape
    x = jnp.broadcast_to(x[:, :, None, :, None, :], (N, H, s, W, s, C))
    return x.reshape(N, H * s, W * s, C)


def mmd_rbf_noaccelerate(source, target, kernel_mul=2.0, kernel_num=5):
    # Standard DAN multi-kernel Gaussian MMD (the `mmd` module is external to the
    # given source); pairwise Gram computed with the Pallas matmul kernel.
    n = source.shape[0]
    total = jnp.concatenate([source, target], axis=0).astype(jnp.float32)
    gram = matmul_fused(total, total.T)
    sq = jnp.diag(gram)
    l2 = jnp.maximum(sq[:, None] + sq[None, :] - 2.0 * gram, 0.0)
    ns = total.shape[0]
    bandwidth = jnp.sum(l2) / (ns * ns - ns)
    bandwidth = bandwidth / (kernel_mul ** (kernel_num // 2))
    kernels = sum(jnp.exp(-l2 / (bandwidth * (kernel_mul ** i)))
                  for i in range(kernel_num))
    XX = kernels[:n, :n]
    YY = kernels[n:, n:]
    XY = kernels[:n, n:]
    YX = kernels[n:, :n]
    return jnp.mean(XX + YY - XY - YX)


# ----------------------------- parameter init -----------------------------

class _KeyGen:
    def __init__(self, key):
        self._key = key

    def __call__(self):
        self._key, sub = jax.random.split(self._key)
        return sub


def conv_init(key, k, cin, cout):
    std = math.sqrt(2.0 / (k * k * cout))          # ResNet init: N(0, sqrt(2/n))
    w = std * jax.random.normal(key, (k, k, cin, cout), jnp.float32)
    return w.astype(jnp.bfloat16)                  # weights stored bf16 (f32 acc in MXU)


def bn_init(c):
    return {'gamma': jnp.ones((c,), jnp.float32),
            'beta': jnp.zeros((c,), jnp.float32),
            'mean': jnp.zeros((c,), jnp.float32),
            'var': jnp.ones((c,), jnp.float32)}


def linear_init(kg, fin, fout):
    bound = 1.0 / math.sqrt(fin)
    w = jax.random.uniform(kg(), (fin, fout), jnp.float32, -bound, bound)
    b = jax.random.uniform(kg(), (fout,), jnp.float32, -bound, bound)
    return {'w': w.astype(jnp.bfloat16), 'b': b}


def conv_bias_init(kg, k, cin, cout):
    bound = 1.0 / math.sqrt(k * k * cin)
    w = jax.random.uniform(kg(), (k, k, cin, cout), jnp.float32, -bound, bound)
    b = jax.random.uniform(kg(), (cout,), jnp.float32, -bound, bound)
    return {'w': w.astype(jnp.bfloat16), 'b': b}


def init_bottleneck(kg, inplanes, planes, stride, downsample):
    p = {'conv1': conv_init(kg(), 1, inplanes, planes), 'bn1': bn_init(planes),
         'conv2': conv_init(kg(), 3, planes, planes), 'bn2': bn_init(planes),
         'conv3': conv_init(kg(), 1, planes, planes * 4), 'bn3': bn_init(planes * 4),
         'stride': stride}
    if downsample:
        p['ds_conv'] = conv_init(kg(), 1, inplanes, planes * 4)
        p['ds_bn'] = bn_init(planes * 4)
    return p


_RESNET50_CFG = (('layer1', 64, 3, 1), ('layer2', 128, 4, 2),
                 ('layer3', 256, 6, 2), ('layer4', 512, 3, 2))


def init_resnet50(kg):
    p = {'conv1': conv_init(kg(), 7, 3, 64), 'bn1': bn_init(64)}
    inplanes = 64
    for name, planes, blocks, stride in _RESNET50_CFG:
        layer = []
        for b in range(blocks):
            s = stride if b == 0 else 1
            ds = (b == 0) and (s != 1 or inplanes != planes * 4)
            layer.append(init_bottleneck(kg, inplanes, planes, s, ds))
            inplanes = planes * 4
        p[name] = layer
    return p


def init_dannet(key, num_classes=31):
    kg = _KeyGen(key)
    return {'sharedNet': init_resnet50(kg),
            'cls_fc': linear_init(kg, 2048, num_classes),
            'fc5': linear_init(kg, 2048, 2048),
            'fc4': linear_init(kg, 2048, 512 * 7 * 7),
            'conv3_': conv_bias_init(kg, 3, 512, 256),
            'conv2_': conv_bias_init(kg, 3, 256, 128),
            'conv1_': conv_bias_init(kg, 3, 128, 64),
            'conv0_': conv_bias_init(kg, 3, 64, 32),
            'conv_last_': conv_bias_init(kg, 3, 32, 3)}


# ----------------------------- forward passes -----------------------------

def bottleneck_fwd(p, x, training):
    stride = p['stride']
    if training:
        # Training BN needs batch stats of the conv output, so conv and BN can't fuse;
        # the BN apply / residual / ReLU are still a single fused Pallas pass.
        out = conv2d_fused(x, p['conv1'], stride=1, pad=0)
        out = batchnorm_act(out, p['bn1'], relu=True, training=True)
        out = conv2d_fused(out, p['conv2'], stride=stride, pad=1)
        out = batchnorm_act(out, p['bn2'], relu=True, training=True)
        out = conv2d_fused(out, p['conv3'], stride=1, pad=0)
        if 'ds_conv' in p:
            residual = conv2d_fused(x, p['ds_conv'], stride=stride, pad=0)
            residual = batchnorm_act(residual, p['ds_bn'], relu=False, training=True)
        else:
            residual = x
        return batchnorm_act(out, p['bn3'], relu=True, residual=residual, training=True)
    # Inference: BN folds into the conv epilogue (scale/shift/residual/ReLU fused).
    s1, b1 = _bn_scale_shift(p['bn1'])
    out = conv2d_fused(x, p['conv1'], s1, b1, stride=1, pad=0, relu=True)
    s2, b2 = _bn_scale_shift(p['bn2'])
    out = conv2d_fused(out, p['conv2'], s2, b2, stride=stride, pad=1, relu=True)
    if 'ds_conv' in p:
        sd, bd = _bn_scale_shift(p['ds_bn'])
        residual = conv2d_fused(x, p['ds_conv'], sd, bd, stride=stride, pad=0, relu=False)
    else:
        residual = x
    s3, b3 = _bn_scale_shift(p['bn3'])
    return conv2d_fused(out, p['conv3'], s3, b3, residual=residual,
                        stride=1, pad=0, relu=True)


def resnet50_fwd(p, x_nchw, training):
    x = jnp.transpose(x_nchw, (0, 2, 3, 1)).astype(jnp.bfloat16)   # NCHW -> NHWC bf16
    if training:
        x = conv2d_fused(x, p['conv1'], stride=2, pad=3)
        x = batchnorm_act(x, p['bn1'], relu=True, training=True)
    else:
        s, b = _bn_scale_shift(p['bn1'])
        x = conv2d_fused(x, p['conv1'], s, b, stride=2, pad=3, relu=True)
    x = maxpool_3x3_s2_p1(x)
    for name, _, _, _ in _RESNET50_CFG:
        for blk in p[name]:
            x = bottleneck_fwd(blk, x, training)
    N, H, W, C = x.shape                                           # (N,7,7,2048)
    return jnp.mean(x.reshape(N, H * W, C).astype(jnp.float32), axis=1)  # AvgPool2d(7)+flatten


def rec_decode(params, feat):
    h = linear(feat, params['fc5'], relu=True, out_dtype=jnp.bfloat16)
    h = linear(h, params['fc4'], relu=True, out_dtype=jnp.bfloat16)
    x = h.reshape(-1, 512, 7, 7)                 # torch .view(-1, 512, 7, 7) (NCHW order)
    x = jnp.transpose(x, (0, 2, 3, 1))           # -> NHWC for conv kernels
    x = conv_bias_act(x, params['conv3_'], relu=True)
    x = upsample_nearest(x, 4)
    x = conv_bias_act(x, params['conv2_'], relu=True)
    x = upsample_nearest(x, 2)
    x = conv_bias_act(x, params['conv1_'], relu=True)
    x = upsample_nearest(x, 2)
    x = conv_bias_act(x, params['conv0_'], relu=True)
    x = upsample_nearest(x, 2)
    x = conv_bias_act(x, params['conv_last_'], relu=False, out_dtype=jnp.float32)
    return jnp.transpose(x, (0, 3, 1, 2))        # back to NCHW


def dannet_rec_fwd(params, source, target, training=True):
    loss = jnp.float32(0.0)
    img_rec_s = 0
    img_rec_t = 0
    src = resnet50_fwd(params['sharedNet'], source, training)
    if training:
        tgt = resnet50_fwd(params['sharedNet'], target, training)
        loss = loss + mmd_rbf_noaccelerate(src, tgt)
        img_rec_s = rec_decode(params, src)
        img_rec_t = rec_decode(params, tgt)
    logits = linear(src, params['cls_fc'], relu=False)
    return logits, loss, img_rec_s, img_rec_t


if __name__ == "__main__":
    root = jax.random.PRNGKey(0)
    kp, ks, kt = jax.random.split(root, 3)
    params = init_dannet(kp, num_classes=31)
    # The ResNet-50 forward (AvgPool2d(7) -> 2048-dim flatten, rec view to 512x7x7)
    # implies 224x224 inputs; batch=2 keeps it small.
    source = jax.random.normal(ks, (2, 3, 224, 224), jnp.float32)
    target = jax.random.normal(kt, (2, 3, 224, 224), jnp.float32)
    logits, loss, rec_s, rec_t = dannet_rec_fwd(params, source, target, training=True)
    jax.block_until_ready((logits, loss, rec_s, rec_t))
    assert logits.shape == (2, 31)
    assert rec_s.shape == (2, 3, 224, 224) and rec_t.shape == (2, 3, 224, 224)
    assert bool(jnp.isfinite(loss))
    print("KERNEL_OK")
</pallas_src>

<mosaic_0001>
module attributes {stable_mosaic.version = 11 : i64} {
  func.func @_mm_fused_kernel(%arg0: i32, %arg1: i32, %arg2: i32, %arg3: memref<512x256xbf16, #tpu.memory_space<vmem>>, %arg4: memref<256x128xbf16, #tpu.memory_space<vmem>>, %arg5: memref<512x128xbf16, #tpu.memory_space<vmem>>, %arg6: memref<512x128xf32, #tpu.memory_space<vmem>>) attributes {dimension_semantics = [#tpu.dimension_semantics<parallel>, #tpu.dimension_semantics<parallel>, #tpu.dimension_semantics<arbitrary>], iteration_bounds = array<i64: 49, 1, 1>, scalar_prefetch = 0 : i64, scratch_operands = 1 : i64, tpu.core_type = #tpu.core_type<tc>, window_params = [{transform_indices = @transform_0, window_bounds = array<i64: 512, 256>}, {transform_indices = @transform_1, window_bounds = array<i64: 256, 128>}, {transform_indices = @transform_2, window_bounds = array<i64: 512, 128>}]} {
    %c0_i32 = arith.constant 0 : i32
    %0 = arith.cmpi eq, %arg2, %c0_i32 : i32
    %1 = arith.extui %0 : i1 to i32
    %c0_i32_0 = arith.constant 0 : i32
    %2 = arith.cmpi ne, %1, %c0_i32_0 : i32
    scf.if %2 {
      %cst_10 = arith.constant 0.000000e+00 : f32
      %12 = vector.broadcast %cst_10 : f32 to vector<512x128xf32>
      %c0_11 = arith.constant 0 : index
      %c0_12 = arith.constant 0 : index
      %13 = vector.load %arg6[%c0_11, %c0_12] : memref<512x128xf32, #tpu.memory_space<vmem>>, vector<512x128xf32>
      tpu.vector_store %arg6[%c0_11, %c0_12], %12 {strides = array<i32>} : memref<512x128xf32, #tpu.memory_space<vmem>>, vector<512x128xf32>,
    } else {
    }
    %c0 = arith.constant 0 : index
    %c0_1 = arith.constant 0 : index
    %3 = vector.load %arg6[%c0, %c0_1] : memref<512x128xf32, #tpu.memory_space<vmem>>, vector<512x128xf32>
    %c0_2 = arith.constant 0 : index
    %c0_3 = arith.constant 0 : index
    %4 = vector.load %arg3[%c0_2, %c0_3] : memref<512x256xbf16, #tpu.memory_space<vmem>>, vector<512x256xbf16>
    %c0_4 = arith.constant 0 : index
    %c0_5 = arith.constant 0 : index
    %5 = vector.load %arg4[%c0_4, %c0_5] : memref<256x128xbf16, #tpu.memory_space<vmem>>, vector<256x128xbf16>
    %cst = arith.constant dense<0.000000e+00> : vector<512x128xf32>
    %6 = tpu.matmul %4, %5, %cst {dimension_numbers = #tpu.dot_dimension_numbers<[1], [0], [0], [1], [0, 0, 1, 1], [], []>} : vector<512x256xbf16>, vector<256x128xbf16>, vector<512x128xf32> -> vector<512x128xf32>
    %7 = arith.addf %3, %6 : vector<512x128xf32>
    %c0_6 = arith.constant 0 : index
    %c0_7 = arith.constant 0 : index
    %8 = vector.load %arg6[%c0_6, %c0_7] : memref<512x128xf32, #tpu.memory_space<vmem>>, vector<512x128xf32>
    tpu.vector_store %arg6[%c0_6, %c0_7], %7 {strides = array<i32>} : memref<512x128xf32, #tpu.memory_space<vmem>>, vector<512x128xf32>,
    %c0_i32_8 = arith.constant 0 : i32
    %9 = arith.cmpi eq, %arg2, %c0_i32_8 : i32
    %10 = arith.extui %9 : i1 to i32
    %c0_i32_9 = arith.constant 0 : i32
    %11 = arith.cmpi ne, %10, %c0_i32_9 : i32
    scf.if %11 {
      %c0_10 = arith.constant 0 : index
      %c0_11 = arith.constant 0 : index
      %12 = vector.load %arg6[%c0_10, %c0_11] : memref<512x128xf32, #tpu.memory_space<vmem>>, vector<512x128xf32>
      %13 = arith.truncf %12 : vector<512x128xf32> to vector<512x128xbf16>
      %c0_12 = arith.constant 0 : index
      %c0_13 = arith.constant 0 : index
      %14 = vector.load %arg5[%c0_12, %c0_13] : memref<512x128xbf16, #tpu.memory_space<vmem>>, vector<512x128xbf16>
      tpu.vector_store %arg5[%c0_12, %c0_13], %13 {strides = array<i32>} : memref<512x128xbf16, #tpu.memory_space<vmem>>, vector<512x128xbf16>,
    } else {
    }
    return
  }
  func.func @transform_0(%arg0: i32, %arg1: i32, %arg2: i32) -> (i32, i32) {
    %c0_i32 = arith.constant 0 : i32
    return %arg0, %arg2 : i32, i32
  }
  func.func @transform_1(%arg0: i32, %arg1: i32, %arg2: i32) -> (i32, i32) {
    %c0_i32 = arith.constant 0 : i32
    return %arg2, %arg1 : i32, i32
  }
  func.func @transform_2(%arg0: i32, %arg1: i32, %arg2: i32) -> (i32, i32) {
    %c0_i32 = arith.constant 0 : i32
    return %arg0, %arg1 : i32, i32
  }
}

</mosaic_0001>

<llo_original>
// kernel: matmul_fused.1
$region0: #{matmul_fused.1}
  #allocation0 [shape = 'u32[]', space=smem, size = 0x4, offset = 0x4, fixed_abs, tag = 'smem constant byte address 0x4 - core index']
  #allocation1 [shape = 'u32[144,128]{1,0:T(1,128)}', space=vmem, size = 0x12000, scoped, tag = 'internal scratch']
  #allocation2 [shape = 'f32[512,128]{1,0:T(8,128)}', space=vmem, size = 0x40000, scoped, tag = 'scratch operand']
  %s0 = inlined_call_operand.vmem [shape: bf16[25088,256], index: 0, kind: input, shape index: {}]
  %s1 = inlined_call_operand.vmem [shape: bf16[256,128], index: 1, kind: input, shape index: {}]
  %s2 = inlined_call_operand.vmem [shape: bf16[25088,128], index: 2, kind: output, shape index: {}]
  %s3 = sld [smem:[#allocation0]]
  $region49: #{matmul_fused.1} parent=0
    _
  %s5 = ssub.s32 1, %s3
  %s6 = scalar_select 0, %s5, %s3
  loop: start=0, step=1, limit=51
  $region2: #{matmul_fused.1} parent=0 // loop_pre_header
    _
  $region3: #{matmul_fused.1} parent=0 // loop_header
    %s8 = sphi 0, %s12
    %p9 = scmp.ge.s32.totalorder %s8, 51
    %s15 = sphi 0, %s34
    %s16 = sphi 0, %s30
    %s17 = sphi 0, %s26
    %s18 = sphi 0, %s15
    %s19 = sphi 0, %s16
    %s20 = sphi 0, %s17
    %s21 = sphi 0, %s18
    %s22 = sphi 0, %s19
    %s23 = sphi 0, %s20
    %s39 = sphi 0, %s41
    %s42 = sphi 0, %s39
    %s43 = sphi 0, %s42
    %s59 = sphi 0, %s43
    %s67 = sphi 0, %s69
    %s70 = sphi 0, %s67
    %s71 = sphi 0, %s70
    %s87 = sphi 0, %s71
    %s95 = sphi 0, %s97
    %s98 = sphi 0, %s95
    %s99 = sphi 0, %s98
    %s115 = sphi 0, %s99
  $region4: #{matmul_fused.1} parent=0 // loop_header_branch
    %11 = sbr.rel (%p9) target = $region8
  $region5: #{matmul_fused.1} parent=0 // loop_body
    %s13 = ssub.s32 %s8, 1
    %s14 = ssub.s32 %s8, 2
    %s24 = sadd.s32 1, %s17
    %p25 = scmp.ge.s32.totalorder %s24, 1
    %s26 = scalar_select %p25, 0, %s24
    %s27 = sadd.s32 1, %s16
    %s28 = scalar_select %p25, %s27, %s16
    %p29 = scmp.ge.s32.totalorder %s28, 1
    %s30 = scalar_select %p29, 0, %s28
    %s31 = sadd.s32 1, %s15
    %s32 = scalar_select %p29, %s31, %s15
    %p33 = scmp.ge.s32.totalorder %s32, 49
    %s34 = scalar_select %p33, 0, %s32
    %s35 = ssub.s32 %s15, %s34
    %s36 = ssub.s32 %s17, %s26
    %s37 = sor.u32 %s35, %s36
    %p38 = scmp.eq.s32.totalorder %s37, 0
    %s40 = sadd.s32 %s39, 1
    %s41 = scalar_select %p38, %s39, %s40
    %p44 = pneg %p38
    %p45 = scmp.eq.s32.totalorder %s8, 48
    %p46 = por %p44, %p45
    %p47 = scmp.ne.s32.totalorder %s39, %s42
    %p48 = scmp.eq.s32.totalorder %s8, 0
    %p49 = por %p47, %p48
    %p50 = scmp.ne.s32.totalorder %s39, %s42
    %p51 = scmp.eq.s32.totalorder %s13, 48
    %p52 = por %p50, %p51
    %p53 = scmp.ne.s32.totalorder %s42, %s43
    %p54 = scmp.eq.s32.totalorder %s13, 0
    %p55 = por %p53, %p54
    %p56 = scmp.ne.s32.totalorder %s42, %s43
    %p57 = scmp.eq.s32.totalorder %s14, 48
    %p58 = por %p56, %p57
    %p60 = scmp.ne.s32.totalorder %s43, %s59
    %p61 = scmp.eq.s32.totalorder %s14, 0
    %p62 = por %p60, %p61
    %s63 = ssub.s32 %s17, %s26
    %s64 = ssub.s32 %s16, %s30
    %s65 = sor.u32 %s63, %s64
    %p66 = scmp.eq.s32.totalorder %s65, 0
    %s68 = sadd.s32 %s67, 1
    %s69 = scalar_select %p66, %s67, %s68
    %p72 = pneg %p66
    %p73 = scmp.eq.s32.totalorder %s8, 48
    %p74 = por %p72, %p73
    %p75 = scmp.ne.s32.totalorder %s67, %s70
    %p76 = scmp.eq.s32.totalorder %s8, 0
    %p77 = por %p75, %p76
    %p78 = scmp.ne.s32.totalorder %s67, %s70
    %p79 = scmp.eq.s32.totalorder %s13, 48
    %p80 = por %p78, %p79
    %p81 = scmp.ne.s32.totalorder %s70, %s71
    %p82 = scmp.eq.s32.totalorder %s13, 0
    %p83 = por %p81, %p82
    %p84 = scmp.ne.s32.totalorder %s70, %s71
    %p85 = scmp.eq.s32.totalorder %s14, 48
    %p86 = por %p84, %p85
    %p88 = scmp.ne.s32.totalorder %s71, %s87
    %p89 = scmp.eq.s32.totalorder %s14, 0
    %p90 = por %p88, %p89
    %s91 = ssub.s32 %s15, %s34
    %s92 = ssub.s32 %s16, %s30
    %s93 = sor.u32 %s91, %s92
    %p94 = scmp.eq.s32.totalorder %s93, 0
    %s96 = sadd.s32 %s95, 1
    %s97 = scalar_select %p94, %s95, %s96
    %p100 = pneg %p94
    %p101 = scmp.eq.s32.totalorder %s8, 48
    %p102 = por %p100, %p101
    %p103 = scmp.ne.s32.totalorder %s95, %s98
    %p104 = scmp.eq.s32.totalorder %s8, 0
    %p105 = por %p103, %p104
    %p106 = scmp.ne.s32.totalorder %s95, %s98
    %p107 = scmp.eq.s32.totalorder %s13, 48
    %p108 = por %p106, %p107
    %p109 = scmp.ne.s32.totalorder %s98, %s99
    %p110 = scmp.eq.s32.totalorder %s13, 0
    %p111 = por %p109, %p110
    %p112 = scmp.ne.s32.totalorder %s98, %s99
    %p113 = scmp.eq.s32.totalorder %s14, 48
    %p114 = por %p112, %p113
    %p116 = scmp.ne.s32.totalorder %s99, %s115
    %p117 = scmp.eq.s32.totalorder %s14, 0
    %p118 = por %p116, %p117
    %p119 = scmp.le.s32.totalorder 1, %s8
    %p120 = scmp.lt.s32.totalorder %s8, 50
    %p121 = pnand %p119, %p120
    %p122 = pneg %p121
    // Predicated region
    $region9: #{matmul_fused.1} parent=5 // pred_check
      _
    $region10: #{matmul_fused.1} parent=5 // pred_check_branch
      %124 = sbr.rel (%p121) target = $region12
    $region11: #{matmul_fused.1} parent=5 // pred_region
      %s125 = ssub.s32 %s8, 1
      // Predicated region
      $region13: #{matmul_fused.1} parent=11 // pred_check
        %p126 = pneg %p83
      $region14: #{matmul_fused.1} parent=11 // pred_check_branch
        %128 = sbr.rel (%p126) target = $region16
      $region15: #{matmul_fused.1} parent=11 // pred_region
        %s129 = smul.u32 32, %s20
        %p130 = scmp.lt.s32.totalorder %s129, 31
        %s131 = scalar_select %p130, %s129, 31
        %p132 = scmp.lt.s32.totalorder %s19, 0
        %s133 = scalar_select %p132, %s19, 0
        %s134 = sadd.s32 %s133, %s131
        %s135 = smul.addr %s134, 4
        %s136 = scalar_lea.vmem %s1, %s135
        %s137 = smul.u32 32, %s20
      $region16: #{matmul_fused.1} parent=11 // pred_fallthru
        _
    $region12: #{matmul_fused.1} parent=5 // pred_fallthru
      _
    %p138 = scmp.lt.s32.totalorder %s8, 49
    // Predicated region
    $region17: #{matmul_fused.1} parent=5 // pred_check
      %p139 = pneg %p138
    $region18: #{matmul_fused.1} parent=5 // pred_check_branch
      %141 = sbr.rel (%p139) target = $region20
    $region19: #{matmul_fused.1} parent=5 // pred_region
      // Predicated region
      $region21: #{matmul_fused.1} parent=19 // pred_check
        %p142 = pneg %p49
      $region22: #{matmul_fused.1} parent=19 // pred_check_branch
        %144 = sbr.rel (%p142) target = $region24
      $region23: #{matmul_fused.1} parent=19 // pred_region
        %s145 = smul.u32 64, %s15
        %s146 = smul.u32 2, %s17
        %p147 = scmp.lt.s32.totalorder %s145, 3135
        %s148 = scalar_select %p147, %s145, 3135
        %p149 = scmp.lt.s32.totalorder %s146, 1
        %s150 = scalar_select %p149, %s146, 1
        %s151 = smul.addr %s148, 2
        %s152 = sadd.s32 %s150, %s151
        %s153 = smul.addr %s152, 4
        %s154 = scalar_lea.vmem %s0, %s153
        %s155 = smul.u32 64, %s15
        %s156 = smul.u32 2, %s17
      $region24: #{matmul_fused.1} parent=19 // pred_fallthru
        _
    $region20: #{matmul_fused.1} parent=5 // pred_fallthru
      _
    %p157 = scmp.le.s32.totalorder 1, %s8
    %p158 = scmp.lt.s32.totalorder %s8, 50
    %p159 = pnand %p157, %p158
    %p160 = pneg %p159
    // Predicated region
    $region25: #{matmul_fused.1} parent=5 // pred_check
      _
    $region26: #{matmul_fused.1} parent=5 // pred_check_branch
      %162 = sbr.rel (%p159) target = $region28
    $region27: #{matmul_fused.1} parent=5 // pred_region
      %s163 = ssub.s32 %s8, 1
      %s164 = smul.u32 64, %s18
      %s165 = smul.u32 2, %s20
      %p166 = scmp.lt.s32.totalorder %s164, 3135
      %s167 = scalar_select %p166, %s164, 3135
      %p168 = scmp.lt.s32.totalorder %s165, 1
      %s169 = scalar_select %p168, %s165, 1
      %s170 = smul.addr %s167, 2
      %s171 = sadd.s32 %s169, %s170
      %s172 = smul.addr %s171, 4
      %s173 = scalar_lea.vmem %s0, %s172
      %p174 = pneg %p55
      %p175 = pneg %p52
      %s176 = smul.u32 32, %s20
      %p177 = scmp.lt.s32.totalorder %s176, 31
      %s178 = scalar_select %p177, %s176, 31
      %p179 = scmp.lt.s32.totalorder %s19, 0
      %s180 = scalar_select %p179, %s19, 0
      %s181 = sadd.s32 %s180, %s178
      %s182 = smul.addr %s181, 4
      %s183 = scalar_lea.vmem %s1, %s182
      %p184 = pneg %p83
      %p185 = pneg %p80
      %p186 = pneg %p111
      %p187 = pneg %p108
      %s188 = smul.u32 64, %s18
      %p189 = scmp.lt.s32.totalorder %s188, 3135
      %s190 = scalar_select %p189, %s188, 3135
      %p191 = scmp.lt.s32.totalorder %s19, 0
      %s192 = scalar_select %p191, %s19, 0
      %s193 = sadd.s32 %s192, %s190
      %s194 = smul.addr %s193, 4
      %s195 = scalar_lea.vmem %s2, %s194
      %s196 = smul.u32 64, %s18
      %s197 = smul.u32 2, %s20
      %p198 = scmp.lt.s32.totalorder %s196, 3135
      %s199 = scalar_select %p198, %s196, 3135
      %p200 = scmp.lt.s32.totalorder %s197, 1
      %s201 = scalar_select %p200, %s197, 1
      %s202 = smul.addr %s199, 2
      %s203 = sadd.s32 %s201, %s202
      %s204 = smul.addr %s203, 4
      %s205 = scalar_lea.vmem %s0, %s204
      %s206 = smul.u32 64, %s18
      %s207 = smul.u32 2, %s20
      %s208 = smul.u32 32, %s20
      %p209 = scmp.lt.s32.totalorder %s208, 31
      %s210 = scalar_select %p209, %s208, 31
      %p211 = scmp.lt.s32.totalorder %s19, 0
      %s212 = scalar_select %p211, %s19, 0
      %s213 = sadd.s32 %s212, %s210
      %s214 = smul.addr %s213, 4
      %s215 = scalar_lea.vmem %s1, %s214
      %s216 = smul.u32 32, %s20
      %s217 = smul.u32 64, %s18
      %p218 = scmp.lt.s32.totalorder %s217, 3135
      %s219 = scalar_select %p218, %s217, 3135
      %p220 = scmp.lt.s32.totalorder %s19, 0
      %s221 = scalar_select %p220, %s19, 0
      %s222 = sadd.s32 %s221, %s219
      %s223 = smul.addr %s222, 4
      %s224 = scalar_lea.vmem %s2, %s223
      %s225 = smul.u32 64, %s18
      %p227 = scmp.eq.s32.totalorder %s20, 0
      // Predicated region
      $region29: #{matmul_fused.1} parent=27 // pred_check
        %p228 = pneg %p227
      $region30: #{matmul_fused.1} parent=27 // pred_check_branch
        %230 = sbr.rel (%p228) target = $region32
      $region31: #{matmul_fused.1} parent=27 // pred_region
        %231 = vst [vmem:[#allocation2] sm:$0xff] 0.0
        %232 = vst [vmem:[#allocation2 + $0x8] sm:$0xff] 0.0
        %233 = vst [vmem:[#allocation2 + $0x10] sm:$0xff] 0.0
        %234 = vst [vmem:[#allocation2 + $0x18] sm:$0xff] 0.0
        %235 = vst [vmem:[#allocation2 + $0x20] sm:$0xff] 0.0
        %236 = vst [vmem:[#allocation2 + $0x28] sm:$0xff] 0.0
        %237 = vst [vmem:[#allocation2 + $0x30] sm:$0xff] 0.0
        %238 = vst [vmem:[#allocation2 + $0x38] sm:$0xff] 0.0
        %239 = vst [vmem:[#allocation2 + $0x40] sm:$0xff] 0.0
        %240 = vst [vmem:[#allocation2 + $0x48] sm:$0xff] 0.0
        %241 = vst [vmem:[#allocation2 + $0x50] sm:$0xff] 0.0
        %242 = vst [vmem:[#allocation2 + $0x58] sm:$0xff] 0.0
        %243 = vst [vmem:[#allocation2 + $0x60] sm:$0xff] 0.0
        %244 = vst [vmem:[#allocation2 + $0x68] sm:$0xff] 0.0
        %245 = vst [vmem:[#allocation2 + $0x70] sm:$0xff] 0.0
        %246 = vst [vmem:[#allocation2 + $0x78] sm:$0xff] 0.0
        %247 = vst [vmem:[#allocation2 + $0x80] sm:$0xff] 0.0
        %248 = vst [vmem:[#allocation2 + $0x88] sm:$0xff] 0.0
        %249 = vst [vmem:[#allocation2 + $0x90] sm:$0xff] 0.0
        %250 = vst [vmem:[#allocation2 + $0x98] sm:$0xff] 0.0
        %251 = vst [vmem:[#allocation2 + $0xa0] sm:$0xff] 0.0
        %252 = vst [vmem:[#allocation2 + $0xa8] sm:$0xff] 0.0
        %253 = vst [vmem:[#allocation2 + $0xb0] sm:$0xff] 0.0
        %254 = vst [vmem:[#allocation2 + $0xb8] sm:$0xff] 0.0
        %255 = vst [vmem:[#allocation2 + $0xc0] sm:$0xff] 0.0
        %256 = vst [vmem:[#allocation2 + $0xc8] sm:$0xff] 0.0
        %257 = vst [vmem:[#allocation2 + $0xd0] sm:$0xff] 0.0
        %258 = vst [vmem:[#allocation2 + $0xd8] sm:$0xff] 0.0
        %259 = vst [vmem:[#allocation2 + $0xe0] sm:$0xff] 0.0
        %260 = vst [vmem:[#allocation2 + $0xe8] sm:$0xff] 0.0
        %261 = vst [vmem:[#allocation2 + $0xf0] sm:$0xff] 0.0
        %262 = vst [vmem:[#allocation2 + $0xf8] sm:$0xff] 0.0
        %263 = vst [vmem:[#allocation2 + $0x100] sm:$0xff] 0.0
        %264 = vst [vmem:[#allocation2 + $0x108] sm:$0xff] 0.0
        %265 = vst [vmem:[#allocation2 + $0x110] sm:$0xff] 0.0
        %266 = vst [vmem:[#allocation2 + $0x118] sm:$0xff] 0.0
        %267 = vst [vmem:[#allocation2 + $0x120] sm:$0xff] 0.0
        %268 = vst [vmem:[#allocation2 + $0x128] sm:$0xff] 0.0
        %269 = vst [vmem:[#allocation2 + $0x130] sm:$0xff] 0.0
        %270 = vst [vmem:[#allocation2 + $0x138] sm:$0xff] 0.0
        %271 = vst [vmem:[#allocation2 + $0x140] sm:$0xff] 0.0
        %272 = vst [vmem:[#allocation2 + $0x148] sm:$0xff] 0.0
        %273 = vst [vmem:[#allocation2 + $0x150] sm:$0xff] 0.0
        %274 = vst [vmem:[#allocation2 + $0x158] sm:$0xff] 0.0
        %275 = vst [vmem:[#allocation2 + $0x160] sm:$0xff] 0.0
        %276 = vst [vmem:[#allocation2 + $0x168] sm:$0xff] 0.0
        %277 = vst [vmem:[#allocation2 + $0x170] sm:$0xff] 0.0
        %278 = vst [vmem:[#allocation2 + $0x178] sm:$0xff] 0.0
        %279 = vst [vmem:[#allocation2 + $0x180] sm:$0xff] 0.0
        %280 = vst [vmem:[#allocation2 + $0x188] sm:$0xff] 0.0
        %281 = vst [vmem:[#allocation2 + $0x190] sm:$0xff] 0.0
        %282 = vst [vmem:[#allocation2 + $0x198] sm:$0xff] 0.0
        %283 = vst [vmem:[#allocation2 + $0x1a0] sm:$0xff] 0.0
        %284 = vst [vmem:[#allocation2 + $0x1a8] sm:$0xff] 0.0
        %285 = vst [vmem:[#allocation2 + $0x1b0] sm:$0xff] 0.0
        %286 = vst [vmem:[#allocation2 + $0x1b8] sm:$0xff] 0.0
        %287 = vst [vmem:[#allocation2 + $0x1c0] sm:$0xff] 0.0
        %288 = vst [vmem:[#allocation2 + $0x1c8] sm:$0xff] 0.0
        %289 = vst [vmem:[#allocation2 + $0x1d0] sm:$0xff] 0.0
        %290 = vst [vmem:[#allocation2 + $0x1d8] sm:$0xff] 0.0
        %291 = vst [vmem:[#allocation2 + $0x1e0] sm:$0xff] 0.0
        %292 = vst [vmem:[#allocation2 + $0x1e8] sm:$0xff] 0.0
        %293 = vst [vmem:[#allocation2 + $0x1f0] sm:$0xff] 0.0
        %294 = vst [vmem:[#allocation2 + $0x1f8] sm:$0xff] 0.0
      $region32: #{matmul_fused.1} parent=27 // pred_fallthru
        _
      %v295 = vld [vmem:[#allocation2] sm:$0xff]
      %v296 = vld [vmem:[#allocation2 + $0x8] sm:$0xff]
      %v297 = vld [vmem:[#allocation2 + $0x10] sm:$0xff]
      %v298 = vld [vmem:[#allocation2 + $0x18] sm:$0xff]
      %v299 = vld [vmem:[#allocation2 + $0x20] sm:$0xff]
      %v300 = vld [vmem:[#allocation2 + $0x28] sm:$0xff]
      %v301 = vld [vmem:[#allocation2 + $0x30] sm:$0xff]
      %v302 = vld [vmem:[#allocation2 + $0x38] sm:$0xff]
      %v303 = vld [vmem:[#allocation2 + $0x40] sm:$0xff]
      %v304 = vld [vmem:[#allocation2 + $0x48] sm:$0xff]
      %v305 = vld [vmem:[#allocation2 + $0x50] sm:$0xff]
      %v306 = vld [vmem:[#allocation2 + $0x58] sm:$0xff]
      %v307 = vld [vmem:[#allocation2 + $0x60] sm:$0xff]
      %v308 = vld [vmem:[#allocation2 + $0x68] sm:$0xff]
      %v309 = vld [vmem:[#allocation2 + $0x70] sm:$0xff]
      %v310 = vld [vmem:[#allocation2 + $0x78] sm:$0xff]
      %v311 = vld [vmem:[#allocation2 + $0x80] sm:$0xff]
      %v312 = vld [vmem:[#allocation2 + $0x88] sm:$0xff]
      %v313 = vld [vmem:[#allocation2 + $0x90] sm:$0xff]
      %v314 = vld [vmem:[#allocation2 + $0x98] sm:$0xff]
      %v315 = vld [vmem:[#allocation2 + $0xa0] sm:$0xff]
      %v316 = vld [vmem:[#allocation2 + $0xa8] sm:$0xff]
      %v317 = vld [vmem:[#allocation2 + $0xb0] sm:$0xff]
      %v318 = vld [vmem:[#allocation2 + $0xb8] sm:$0xff]
      %v319 = vld [vmem:[#allocation2 + $0xc0] sm:$0xff]
      %v320 = vld [vmem:[#allocation2 + $0xc8] sm:$0xff]
      %v321 = vld [vmem:[#allocation2 + $0xd0] sm:$0xff]
      %v322 = vld [vmem:[#allocation2 + $0xd8] sm:$0xff]
      %v323 = vld [vmem:[#allocation2 + $0xe0] sm:$0xff]
      %v324 = vld [vmem:[#allocation2 + $0xe8] sm:$0xff]
      %v325 = vld [vmem:[#allocation2 + $0xf0] sm:$0xff]
      %v326 = vld [vmem:[#allocation2 + $0xf8] sm:$0xff]
      %v327 = vld [vmem:[#allocation2 + $0x100] sm:$0xff]
      %v328 = vld [vmem:[#allocation2 + $0x108] sm:$0xff]
      %v329 = vld [vmem:[#allocation2 + $0x110] sm:$0xff]
      %v330 = vld [vmem:[#allocation2 + $0x118] sm:$0xff]
      %v331 = vld [vmem:[#allocation2 + $0x120] sm:$0xff]
      %v332 = vld [vmem:[#allocation2 + $0x128] sm:$0xff]
      %v333 = vld [vmem:[#allocation2 + $0x130] sm:$0xff]
      %v334 = vld [vmem:[#allocation2 + $0x138] sm:$0xff]
      %v335 = vld [vmem:[#allocation2 + $0x140] sm:$0xff]
      %v336 = vld [vmem:[#allocation2 + $0x148] sm:$0xff]
      %v337 = vld [vmem:[#allocation2 + $0x150] sm:$0xff]
      %v338 = vld [vmem:[#allocation2 + $0x158] sm:$0xff]
      %v339 = vld [vmem:[#allocation2 + $0x160] sm:$0xff]
      %v340 = vld [vmem:[#allocation2 + $0x168] sm:$0xff]
      %v341 = vld [vmem:[#allocation2 + $0x170] sm:$0xff]
      %v342 = vld [vmem:[#allocation2 + $0x178] sm:$0xff]
      %v343 = vld [vmem:[#allocation2 + $0x180] sm:$0xff]
      %v344 = vld [vmem:[#allocation2 + $0x188] sm:$0xff]
      %v345 = vld [vmem:[#allocation2 + $0x190] sm:$0xff]
      %v346 = vld [vmem:[#allocation2 + $0x198] sm:$0xff]
      %v347 = vld [vmem:[#allocation2 + $0x1a0] sm:$0xff]
      %v348 = vld [vmem:[#allocation2 + $0x1a8] sm:$0xff]
      %v349 = vld [vmem:[#allocation2 + $0x1b0] sm:$0xff]
      %v350 = vld [vmem:[#allocation2 + $0x1b8] sm:$0xff]
      %v351 = vld [vmem:[#allocation2 + $0x1c0] sm:$0xff]
      %v352 = vld [vmem:[#allocation2 + $0x1c8] sm:$0xff]
      %v353 = vld [vmem:[#allocation2 + $0x1d0] sm:$0xff]
      %v354 = vld [vmem:[#allocation2 + $0x1d8] sm:$0xff]
      %v355 = vld [vmem:[#allocation2 + $0x1e0] sm:$0xff]
      %v356 = vld [vmem:[#allocation2 + $0x1e8] sm:$0xff]
      %v357 = vld [vmem:[#allocation2 + $0x1f0] sm:$0xff]
      %v358 = vld [vmem:[#allocation2 + $0x1f8] sm:$0xff]
      %v359 = vld [vmem:[%s205] sm:$0xff]
      %v360 = vld [vmem:[%s205 + $0x8] sm:$0xff]
      %v361 = vld [vmem:[%s205 + $0x10] sm:$0xff]
      %v362 = vld [vmem:[%s205 + $0x18] sm:$0xff]
      %v363 = vld [vmem:[%s205 + $0x20] sm:$0xff]
      %v364 = vld [vmem:[%s205 + $0x28] sm:$0xff]
      %v365 = vld [vmem:[%s205 + $0x30] sm:$0xff]
      %v366 = vld [vmem:[%s205 + $0x38] sm:$0xff]
      %v367 = vld [vmem:[%s205 + $0x40] sm:$0xff]
      %v368 = vld [vmem:[%s205 + $0x48] sm:$0xff]
      %v369 = vld [vmem:[%s205 + $0x50] sm:$0xff]
      %v370 = vld [vmem:[%s205 + $0x58] sm:$0xff]
      %v371 = vld [vmem:[%s205 + $0x60] sm:$0xff]
      %v372 = vld [vmem:[%s205 + $0x68] sm:$0xff]
      %v373 = vld [vmem:[%s205 + $0x70] sm:$0xff]
      %v374 = vld [vmem:[%s205 + $0x78] sm:$0xff]
      %v375 = vld [vmem:[%s205 + $0x80] sm:$0xff]
      %v376 = vld [vmem:[%s205 + $0x88] sm:$0xff]
      %v377 = vld [vmem:[%s205 + $0x90] sm:$0xff]
      %v378 = vld [vmem:[%s205 + $0x98] sm:$0xff]
      %v379 = vld [vmem:[%s205 + $0xa0] sm:$0xff]
      %v380 = vld [vmem:[%s205 + $0xa8] sm:$0xff]
      %v381 = vld [vmem:[%s205 + $0xb0] sm:$0xff]
      %v382 = vld [vmem:[%s205 + $0xb8] sm:$0xff]
      %v383 = vld [vmem:[%s205 + $0xc0] sm:$0xff]
      %v384 = vld [vmem:[%s205 + $0xc8] sm:$0xff]
      %v385 = vld [vmem:[%s205 + $0xd0] sm:$0xff]
      %v386 = vld [vmem:[%s205 + $0xd8] sm:$0xff]
      %v387 = vld [vmem:[%s205 + $0xe0] sm:$0xff]
      %v388 = vld [vmem:[%s205 + $0xe8] sm:$0xff]
      %v389 = vld [vmem:[%s205 + $0xf0] sm:$0xff]
      %v390 = vld [vmem:[%s205 + $0xf8] sm:$0xff]
      %v391 = vld [vmem:[%s205 + $0x100] sm:$0xff]
      %v392 = vld [vmem:[%s205 + $0x108] sm:$0xff]
      %v393 = vld [vmem:[%s205 + $0x110] sm:$0xff]
      %v394 = vld [vmem:[%s205 + $0x118] sm:$0xff]
      %v395 = vld [vmem:[%s205 + $0x120] sm:$0xff]
      %v396 = vld [vmem:[%s205 + $0x128] sm:$0xff]
      %v397 = vld [vmem:[%s205 + $0x130] sm:$0xff]
      %v398 = vld [vmem:[%s205 + $0x138] sm:$0xff]
      %v399 = vld [vmem:[%s205 + $0x140] sm:$0xff]
      %v400 = vld [vmem:[%s205 + $0x148] sm:$0xff]
      %v401 = vld [vmem:[%s205 + $0x150] sm:$0xff]
      %v402 = vld [vmem:[%s205 + $0x158] sm:$0xff]
      %v403 = vld [vmem:[%s205 + $0x160] sm:$0xff]
      %v404 = vld [vmem:[%s205 + $0x168] sm:$0xff]
      %v405 = vld [vmem:[%s205 + $0x170] sm:$0xff]
      %v406 = vld [vmem:[%s205 + $0x178] sm:$0xff]
      %v407 = vld [vmem:[%s205 + $0x180] sm:$0xff]
      %v408 = vld [vmem:[%s205 + $0x188] sm:$0xff]
      %v409 = vld [vmem:[%s205 + $0x190] sm:$0xff]
      %v410 = vld [vmem:[%s205 + $0x198] sm:$0xff]
      %v411 = vld [vmem:[%s205 + $0x1a0] sm:$0xff]
      %v412 = vld [vmem:[%s205 + $0x1a8] sm:$0xff]
      %v413 = vld [vmem:[%s205 + $0x1b0] sm:$0xff]
      %v414 = vld [vmem:[%s205 + $0x1b8] sm:$0xff]
      %v415 = vld [vmem:[%s205 + $0x1c0] sm:$0xff]
      %v416 = vld [vmem:[%s205 + $0x1c8] sm:$0xff]
      %v417 = vld [vmem:[%s205 + $0x1d0] sm:$0xff]
      %v418 = vld [vmem:[%s205 + $0x1d8] sm:$0xff]
      %v419 = vld [vmem:[%s205 + $0x1e0] sm:$0xff]
      %v420 = vld [vmem:[%s205 + $0x1e8] sm:$0xff]
      %v421 = vld [vmem:[%s205 + $0x1f0] sm:$0xff]
      %v422 = vld [vmem:[%s205 + $0x1f8] sm:$0xff]
      %v423 = vld [vmem:[%s215] sm:$0xf]
      %v424 = vld [vmem:[%s215 + $0x4] sm:$0xf]
      %v425 = vld [vmem:[%s215 + $0x8] sm:$0xf]
      %v426 = vld [vmem:[%s215 + $0xc] sm:$0xf]
      %v427 = vld [vmem:[%s215 + $0x10] sm:$0xf]
      %v428 = vld [vmem:[%s215 + $0x14] sm:$0xf]
      %v429 = vld [vmem:[%s215 + $0x18] sm:$0xf]
      %v430 = vld [vmem:[%s215 + $0x1c] sm:$0xf]
      %v431 = vld [vmem:[%s215 + $0x20] sm:$0xf]
      %v432 = vld [vmem:[%s215 + $0x24] sm:$0xf]
      %v433 = vld [vmem:[%s215 + $0x28] sm:$0xf]
      %v434 = vld [vmem:[%s215 + $0x2c] sm:$0xf]
      %v435 = vld [vmem:[%s215 + $0x30] sm:$0xf]
      %v436 = vld [vmem:[%s215 + $0x34] sm:$0xf]
      %v437 = vld [vmem:[%s215 + $0x38] sm:$0xf]
      %v438 = vld [vmem:[%s215 + $0x3c] sm:$0xf]
      %v439 = vld [vmem:[%s215 + $0x40] sm:$0xf]
      %v440 = vld [vmem:[%s215 + $0x44] sm:$0xf]
      %v441 = vld [vmem:[%s215 + $0x48] sm:$0xf]
      %v442 = vld [vmem:[%s215 + $0x4c] sm:$0xf]
      %v443 = vld [vmem:[%s215 + $0x50] sm:$0xf]
      %v444 = vld [vmem:[%s215 + $0x54] sm:$0xf]
      %v445 = vld [vmem:[%s215 + $0x58] sm:$0xf]
      %v446 = vld [vmem:[%s215 + $0x5c] sm:$0xf]
      %v447 = vld [vmem:[%s215 + $0x60] sm:$0xf]
      %v448 = vld [vmem:[%s215 + $0x64] sm:$0xf]
      %v449 = vld [vmem:[%s215 + $0x68] sm:$0xf]
      %v450 = vld [vmem:[%s215 + $0x6c] sm:$0xf]
      %v451 = vld [vmem:[%s215 + $0x70] sm:$0xf]
      %v452 = vld [vmem:[%s215 + $0x74] sm:$0xf]
      %v453 = vld [vmem:[%s215 + $0x78] sm:$0xf]
      %v454 = vld [vmem:[%s215 + $0x7c] sm:$0xf]
      %v519 = vunpack.c.l.b16 %v359
      %v520 = vunpack.c.h.b16 %v359
      %v521 = vunpack.c.l.b16 %v360
      %v522 = vunpack.c.h.b16 %v360
      %v523 = vunpack.c.l.b16 %v361
      %v524 = vunpack.c.h.b16 %v361
      %v525 = vunpack.c.l.b16 %v362
      %v526 = vunpack.c.h.b16 %v362
      %v527 = vunpack.c.l.b16 %v363
      %v528 = vunpack.c.h.b16 %v363
      %v529 = vunpack.c.l.b16 %v364
      %v530 = vunpack.c.h.b16 %v364
      %v531 = vunpack.c.l.b16 %v365
      %v532 = vunpack.c.h.b16 %v365
      %v533 = vunpack.c.l.b16 %v366
      %v534 = vunpack.c.h.b16 %v366
      %v535 = vunpack.c.l.b16 %v367
      %v536 = vunpack.c.h.b16 %v367
      %v537 = vunpack.c.l.b16 %v368
      %v538 = vunpack.c.h.b16 %v368
      %v539 = vunpack.c.l.b16 %v369
      %v540 = vunpack.c.h.b16 %v369
      %v541 = vunpack.c.l.b16 %v370
      %v542 = vunpack.c.h.b16 %v370
      %v543 = vunpack.c.l.b16 %v371
      %v544 = vunpack.c.h.b16 %v371
      %v545 = vunpack.c.l.b16 %v372
      %v546 = vunpack.c.h.b16 %v372
      %v547 = vunpack.c.l.b16 %v373
      %v548 = vunpack.c.h.b16 %v373
      %v549 = vunpack.c.l.b16 %v374
      %v550 = vunpack.c.h.b16 %v374
      %v551 = vunpack.c.l.b16 %v375
      %v552 = vunpack.c.h.b16 %v375
      %v553 = vunpack.c.l.b16 %v376
      %v554 = vunpack.c.h.b16 %v376
      %v555 = vunpack.c.l.b16 %v377
      %v556 = vunpack.c.h.b16 %v377
      %v557 = vunpack.c.l.b16 %v378
      %v558 = vunpack.c.h.b16 %v378
      %v559 = vunpack.c.l.b16 %v379
      %v560 = vunpack.c.h.b16 %v379
      %v561 = vunpack.c.l.b16 %v380
      %v562 = vunpack.c.h.b16 %v380
      %v563 = vunpack.c.l.b16 %v381
      %v564 = vunpack.c.h.b16 %v381
      %v565 = vunpack.c.l.b16 %v382
      %v566 = vunpack.c.h.b16 %v382
      %v567 = vunpack.c.l.b16 %v383
      %v568 = vunpack.c.h.b16 %v383
      %v569 = vunpack.c.l.b16 %v384
      %v570 = vunpack.c.h.b16 %v384
      %v571 = vunpack.c.l.b16 %v385
      %v572 = vunpack.c.h.b16 %v385
      %v573 = vunpack.c.l.b16 %v386
      %v574 = vunpack.c.h.b16 %v386
      %v575 = vunpack.c.l.b16 %v387
      %v576 = vunpack.c.h.b16 %v387
      %v577 = vunpack.c.l.b16 %v388
      %v578 = vunpack.c.h.b16 %v388
      %v579 = vunpack.c.l.b16 %v389
      %v580 = vunpack.c.h.b16 %v389
      %v581 = vunpack.c.l.b16 %v390
      %v582 = vunpack.c.h.b16 %v390
      %v583 = vunpack.c.l.b16 %v391
      %v584 = vunpack.c.h.b16 %v391
      %v585 = vunpack.c.l.b16 %v392
      %v586 = vunpack.c.h.b16 %v392
      %v587 = vunpack.c.l.b16 %v393
      %v588 = vunpack.c.h.b16 %v393
      %v589 = vunpack.c.l.b16 %v394
      %v590 = vunpack.c.h.b16 %v394
      %v591 = vunpack.c.l.b16 %v395
      %v592 = vunpack.c.h.b16 %v395
      %v593 = vunpack.c.l.b16 %v396
      %v594 = vunpack.c.h.b16 %v396
      %v595 = vunpack.c.l.b16 %v397
      %v596 = vunpack.c.h.b16 %v397
      %v597 = vunpack.c.l.b16 %v398
      %v598 = vunpack.c.h.b16 %v398
      %v599 = vunpack.c.l.b16 %v399
      %v600 = vunpack.c.h.b16 %v399
      %v601 = vunpack.c.l.b16 %v400
      %v602 = vunpack.c.h.b16 %v400
      %v603 = vunpack.c.l.b16 %v401
      %v604 = vunpack.c.h.b16 %v401
      %v605 = vunpack.c.l.b16 %v402
      %v606 = vunpack.c.h.b16 %v402
      %v607 = vunpack.c.l.b16 %v403
      %v608 = vunpack.c.h.b16 %v403
      %v609 = vunpack.c.l.b16 %v404
      %v610 = vunpack.c.h.b16 %v404
      %v611 = vunpack.c.l.b16 %v405
      %v612 = vunpack.c.h.b16 %v405
      %v613 = vunpack.c.l.b16 %v406
      %v614 = vunpack.c.h.b16 %v406
      %v615 = vunpack.c.l.b16 %v407
      %v616 = vunpack.c.h.b16 %v407
      %v617 = vunpack.c.l.b16 %v408
      %v618 = vunpack.c.h.b16 %v408
      %v619 = vunpack.c.l.b16 %v409
      %v620 = vunpack.c.h.b16 %v409
      %v621 = vunpack.c.l.b16 %v410
      %v622 = vunpack.c.h.b16 %v410
      %v623 = vunpack.c.l.b16 %v411
      %v624 = vunpack.c.h.b16 %v411
      %v625 = vunpack.c.l.b16 %v412
      %v626 = vunpack.c.h.b16 %v412
      %v627 = vunpack.c.l.b16 %v413
      %v628 = vunpack.c.h.b16 %v413
      %v629 = vunpack.c.l.b16 %v414
      %v630 = vunpack.c.h.b16 %v414
      %v631 = vunpack.c.l.b16 %v415
      %v632 = vunpack.c.h.b16 %v415
      %v633 = vunpack.c.l.b16 %v416
      %v634 = vunpack.c.h.b16 %v416
      %v635 = vunpack.c.l.b16 %v417
      %v636 = vunpack.c.h.b16 %v417
      %v637 = vunpack.c.l.b16 %v418
      %v638 = vunpack.c.h.b16 %v418
      %v639 = vunpack.c.l.b16 %v419
      %v640 = vunpack.c.h.b16 %v419
      %v641 = vunpack.c.l.b16 %v420
      %v642 = vunpack.c.h.b16 %v420
      %v643 = vunpack.c.l.b16 %v421
      %v644 = vunpack.c.h.b16 %v421
      %v645 = vunpack.c.l.b16 %v422
      %v646 = vunpack.c.h.b16 %v422
      %v647 = vpack.c.b16 %v521, %v519
      %v648 = vpack.c.b16 %v522, %v520
      %v649 = vpack.c.b16 %v525, %v523
      %v650 = vpack.c.b16 %v526, %v524
      %v651 = vpack.c.b16 %v529, %v527
      %v652 = vpack.c.b16 %v530, %v528
      %v653 = vpack.c.b16 %v533, %v531
      %v654 = vpack.c.b16 %v534, %v532
      %v655 = vpack.c.b16 %v537, %v535
      %v656 = vpack.c.b16 %v538, %v536
      %v657 = vpack.c.b16 %v541, %v539
      %v658 = vpack.c.b16 %v542, %v540
      %v659 = vpack.c.b16 %v545, %v543
      %v660 = vpack.c.b16 %v546, %v544
      %v661 = vpack.c.b16 %v549, %v547
      %v662 = vpack.c.b16 %v550, %v548
      %v663 = vpack.c.b16 %v553, %v551
      %v664 = vpack.c.b16 %v554, %v552
      %v665 = vpack.c.b16 %v557, %v555
      %v666 = vpack.c.b16 %v558, %v556
      %v667 = vpack.c.b16 %v561, %v559
      %v668 = vpack.c.b16 %v562, %v560
      %v669 = vpack.c.b16 %v565, %v563
      %v670 = vpack.c.b16 %v566, %v564
      %v671 = vpack.c.b16 %v569, %v567
      %v672 = vpack.c.b16 %v570, %v568
      %v673 = vpack.c.b16 %v573, %v571
      %v674 = vpack.c.b16 %v574, %v572
      %v675 = vpack.c.b16 %v577, %v575
      %v676 = vpack.c.b16 %v578, %v576
      %v677 = vpack.c.b16 %v581, %v579
      %v678 = vpack.c.b16 %v582, %v580
      %v679 = vpack.c.b16 %v585, %v583
      %v680 = vpack.c.b16 %v586, %v584
      %v681 = vpack.c.b16 %v589, %v587
      %v682 = vpack.c.b16 %v590, %v588
      %v683 = vpack.c.b16 %v593, %v591
      %v684 = vpack.c.b16 %v594, %v592
      %v685 = vpack.c.b16 %v597, %v595
      %v686 = vpack.c.b16 %v598, %v596
      %v687 = vpack.c.b16 %v601, %v599
      %v688 = vpack.c.b16 %v602, %v600
      %v689 = vpack.c.b16 %v605, %v603
      %v690 = vpack.c.b16 %v606, %v604
      %v691 = vpack.c.b16 %v609, %v607
      %v692 = vpack.c.b16 %v610, %v608
      %v693 = vpack.c.b16 %v613, %v611
      %v694 = vpack.c.b16 %v614, %v612
      %v695 = vpack.c.b16 %v617, %v615
      %v696 = vpack.c.b16 %v618, %v616
      %v697 = vpack.c.b16 %v621, %v619
      %v698 = vpack.c.b16 %v622, %v620
      %v699 = vpack.c.b16 %v625, %v623
      %v700 = vpack.c.b16 %v626, %v624
      %v701 = vpack.c.b16 %v629, %v627
      %v702 = vpack.c.b16 %v630, %v628
      %v703 = vpack.c.b16 %v633, %v631
      %v704 = vpack.c.b16 %v634, %v632
      %v705 = vpack.c.b16 %v637, %v635
      %v706 = vpack.c.b16 %v638, %v636
      %v707 = vpack.c.b16 %v641, %v639
      %v708 = vpack.c.b16 %v642, %v640
      %v709 = vpack.c.b16 %v645, %v643
      %v710 = vpack.c.b16 %v646, %v644
      %v807 = vunpack.c.l.b16 %v423
      %v808 = vunpack.c.l.b16 %v424
      %v809 = vunpack.c.l.b16 %v425
      %v810 = vunpack.c.l.b16 %v426
      %v811 = vunpack.c.l.b16 %v427
      %v812 = vunpack.c.l.b16 %v428
      %v813 = vunpack.c.l.b16 %v429
      %v814 = vunpack.c.l.b16 %v430
      %v815 = vunpack.c.l.b16 %v431
      %v816 = vunpack.c.l.b16 %v432
      %v817 = vunpack.c.l.b16 %v433
      %v818 = vunpack.c.l.b16 %v434
      %v819 = vunpack.c.l.b16 %v435
      %v820 = vunpack.c.l.b16 %v436
      %v821 = vunpack.c.l.b16 %v437
      %v822 = vunpack.c.l.b16 %v438
      %v823 = vunpack.c.l.b16 %v439
      %v824 = vunpack.c.l.b16 %v440
      %v825 = vunpack.c.l.b16 %v441
      %v826 = vunpack.c.l.b16 %v442
      %v827 = vunpack.c.l.b16 %v443
      %v828 = vunpack.c.l.b16 %v444
      %v829 = vunpack.c.l.b16 %v445
      %v830 = vunpack.c.l.b16 %v446
      %v831 = vunpack.c.l.b16 %v447
      %v832 = vunpack.c.l.b16 %v448
      %v833 = vunpack.c.l.b16 %v449
      %v834 = vunpack.c.l.b16 %v450
      %v835 = vunpack.c.l.b16 %v451
      %v836 = vunpack.c.l.b16 %v452
      %v837 = vunpack.c.l.b16 %v453
      %v838 = vunpack.c.l.b16 %v454
      %v839 = vpack.c.b16 %v808, %v807
      %v840 = vpack.c.b16 %v810, %v809
      %v841 = vpack.c.b16 %v812, %v811
      %v842 = vpack.c.b16 %v814, %v813
      %v843 = vpack.c.b16 %v816, %v815
      %v844 = vpack.c.b16 %v818, %v817
      %v845 = vpack.c.b16 %v820, %v819
      %v846 = vpack.c.b16 %v822, %v821
      %v847 = vpack.c.b16 %v824, %v823
      %v848 = vpack.c.b16 %v826, %v825
      %v849 = vpack.c.b16 %v828, %v827
      %v850 = vpack.c.b16 %v830, %v829
      %v851 = vpack.c.b16 %v832, %v831
      %v852 = vpack.c.b16 %v834, %v833
      %v853 = vpack.c.b16 %v836, %v835
      %v854 = vpack.c.b16 %v838, %v837
      %871 = vmatprep.subr.bf16.mxu0 0
      %872 = vmatpush1.bf16.msra.mxu0 %v846
      %873 = vmatprep.subr.bf16.mxu0 0
      %874 = vmatpush1.bf16.msra.mxu0 %v845
      %875 = vmatprep.subr.bf16.mxu0 0
      %876 = vmatpush1.bf16.msra.mxu0 %v844
      %877 = vmatprep.subr.bf16.mxu0 0
      %878 = vmatpush1.bf16.msra.mxu0 %v843
      %879 = vmatprep.subr.bf16.mxu0 0
      %880 = vmatpush1.bf16.msra.mxu0 %v842
      %881 = vmatprep.subr.bf16.mxu0 0
      %882 = vmatpush1.bf16.msra.mxu0 %v841
      %883 = vmatprep.subr.bf16.mxu0 0
      %884 = vmatpush1.bf16.msra.mxu0 %v840
      %885 = vmatprep.subr.bf16.mxu0 0
      %886 = vmatpush1.bf16.msra.mxu0 %v839
      %887 = vmatprep.subr.bf16.mxu0 0
      %888 = vmatpush2.bf16.msra.mxu0 %v854
      %889 = vmatprep.subr.bf16.mxu0 0
      %890 = vmatpush2.bf16.msra.mxu0 %v853
      %891 = vmatprep.subr.bf16.mxu0 0
      %892 = vmatpush2.bf16.msra.mxu0 %v852
      %893 = vmatprep.subr.bf16.mxu0 0
      %894 = vmatpush2.bf16.msra.mxu0 %v851
      %895 = vmatprep.subr.bf16.mxu0 0
      %896 = vmatpush2.bf16.msra.mxu0 %v850
      %897 = vmatprep.subr.bf16.mxu0 0
      %898 = vmatpush2.bf16.msra.mxu0 %v849
      %899 = vmatprep.subr.bf16.mxu0 0
      %900 = vmatpush2.bf16.msra.mxu0 %v848
      %901 = vmatprep.subr.bf16.mxu0 0
      %902 = vmatpush2.bf16.msra.mxu0 %v847
      %903 = vmatprep.mubr.bf16.mxu0 %v648
      %904 = vmatmul.mubr.bf16.gmra.mxu0 %v647
      %v905 = vpop.f32.mrf.mxu0
      %v906 = vadd.f32 0.0, %v905
      %v907 = vpop.f32.mrf.mxu0
      %v908 = vpop.f32.mrf.mxu0
      %v909 = vadd.f32 0.0, %v908
      %v910 = vpop.f32.mrf.mxu0
      %911 = vmatprep.mubr.bf16.mxu0 %v650
      %912 = vmatmul.mubr.bf16.gmra.mxu0 %v649
      %v913 = vpop.f32.mrf.mxu0
      %v914 = vadd.f32 0.0, %v913
      %v915 = vpop.f32.mrf.mxu0
      %v916 = vpop.f32.mrf.mxu0
      %v917 = vadd.f32 0.0, %v916
      %v918 = vpop.f32.mrf.mxu0
      %919 = vmatprep.mubr.bf16.mxu0 %v652
      %920 = vmatmul.mubr.bf16.gmra.mxu0 %v651
      %v921 = vpop.f32.mrf.mxu0
      %v922 = vadd.f32 0.0, %v921
      %v923 = vpop.f32.mrf.mxu0
      %v924 = vpop.f32.mrf.mxu0
      %v925 = vadd.f32 0.0, %v924
      %v926 = vpop.f32.mrf.mxu0
      %927 = vmatprep.mubr.bf16.mxu0 %v654
      %928 = vmatmul.mubr.bf16.gmra.mxu0 %v653
      %v929 = vpop.f32.mrf.mxu0
      %v930 = vadd.f32 0.0, %v929
      %v931 = vpop.f32.mrf.mxu0
      %v932 = vpop.f32.mrf.mxu0
      %v933 = vadd.f32 0.0, %v932
      %v934 = vpop.f32.mrf.mxu0
      %935 = vmatprep.mubr.bf16.mxu0 %v656
      %936 = vmatmul.mubr.bf16.gmra.mxu0 %v655
      %v937 = vpop.f32.mrf.mxu0
      %v938 = vadd.f32 0.0, %v937
      %v939 = vpop.f32.mrf.mxu0
      %v940 = vpop.f32.mrf.mxu0
      %v941 = vadd.f32 0.0, %v940
      %v942 = vpop.f32.mrf.mxu0
      %943 = vmatprep.mubr.bf16.mxu0 %v658
      %944 = vmatmul.mubr.bf16.gmra.mxu0 %v657
      %v945 = vpop.f32.mrf.mxu0
      %v946 = vadd.f32 0.0, %v945
      %v947 = vpop.f32.mrf.mxu0
      %v948 = vpop.f32.mrf.mxu0
      %v949 = vadd.f32 0.0, %v948
      %v950 = vpop.f32.mrf.mxu0
      %951 = vmatprep.mubr.bf16.mxu0 %v660
      %952 = vmatmul.mubr.bf16.gmra.mxu0 %v659
      %v953 = vpop.f32.mrf.mxu0
      %v954 = vadd.f32 0.0, %v953
      %v955 = vpop.f32.mrf.mxu0
      %v956 = vpop.f32.mrf.mxu0
      %v957 = vadd.f32 0.0, %v956
      %v958 = vpop.f32.mrf.mxu0
      %959 = vmatprep.mubr.bf16.mxu0 %v662
      %960 = vmatmul.mubr.bf16.gmra.mxu0 %v661
      %v961 = vpop.f32.mrf.mxu0
      %v962 = vadd.f32 0.0, %v961
      %v963 = vpop.f32.mrf.mxu0
      %v964 = vpop.f32.mrf.mxu0
      %v965 = vadd.f32 0.0, %v964
      %v966 = vpop.f32.mrf.mxu0
      %967 = vmatprep.mubr.bf16.mxu0 %v664
      %968 = vmatmul.mubr.bf16.gmra.mxu0 %v663
      %v969 = vpop.f32.mrf.mxu0
      %v970 = vadd.f32 0.0, %v969
      %v971 = vpop.f32.mrf.mxu0
      %v972 = vpop.f32.mrf.mxu0
      %v973 = vadd.f32 0.0, %v972
      %v974 = vpop.f32.mrf.mxu0
      %975 = vmatprep.mubr.bf16.mxu0 %v666
      %976 = vmatmul.mubr.bf16.gmra.mxu0 %v665
      %v977 = vpop.f32.mrf.mxu0
      %v978 = vadd.f32 0.0, %v977
      %v979 = vpop.f32.mrf.mxu0
      %v980 = vpop.f32.mrf.mxu0
      %v981 = vadd.f32 0.0, %v980
      %v982 = vpop.f32.mrf.mxu0
      %983 = vmatprep.mubr.bf16.mxu0 %v668
      %984 = vmatmul.mubr.bf16.gmra.mxu0 %v667
      %v985 = vpop.f32.mrf.mxu0
      %v986 = vadd.f32 0.0, %v985
      %v987 = vpop.f32.mrf.mxu0
      %v988 = vpop.f32.mrf.mxu0
      %v989 = vadd.f32 0.0, %v988
      %v990 = vpop.f32.mrf.mxu0
      %991 = vmatprep.mubr.bf16.mxu0 %v670
      %992 = vmatmul.mubr.bf16.gmra.mxu0 %v669
      %v993 = vpop.f32.mrf.mxu0
      %v994 = vadd.f32 0.0, %v993
      %v995 = vpop.f32.mrf.mxu0
      %v996 = vpop.f32.mrf.mxu0
      %v997 = vadd.f32 0.0, %v996
      %v998 = vpop.f32.mrf.mxu0
      %999 = vmatprep.mubr.bf16.mxu0 %v672
      %1000 = vmatmul.mubr.bf16.gmra.mxu0 %v671
      %v1001 = vpop.f32.mrf.mxu0
      %v1002 = vadd.f32 0.0, %v1001
      %v1003 = vpop.f32.mrf.mxu0
      %v1004 = vpop.f32.mrf.mxu0
      %v1005 = vadd.f32 0.0, %v1004
      %v1006 = vpop.f32.mrf.mxu0
      %1007 = vmatprep.mubr.bf16.mxu0 %v674
      %1008 = vmatmul.mubr.bf16.gmra.mxu0 %v673
      %v1009 = vpop.f32.mrf.mxu0
      %v1010 = vadd.f32 0.0, %v1009
      %v1011 = vpop.f32.mrf.mxu0
      %v1012 = vpop.f32.mrf.mxu0
      %v1013 = vadd.f32 0.0, %v1012
      %v1014 = vpop.f32.mrf.mxu0
      %1015 = vmatprep.mubr.bf16.mxu0 %v676
      %1016 = vmatmul.mubr.bf16.gmra.mxu0 %v675
      %v1017 = vpop.f32.mrf.mxu0
      %v1018 = vadd.f32 0.0, %v1017
      %v1019 = vpop.f32.mrf.mxu0
      %v1020 = vpop.f32.mrf.mxu0
      %v1021 = vadd.f32 0.0, %v1020
      %v1022 = vpop.f32.mrf.mxu0
      %1023 = vmatprep.mubr.bf16.mxu0 %v678
      %1024 = vmatmul.mubr.bf16.gmra.mxu0 %v677
      %v1025 = vpop.f32.mrf.mxu0
      %v1026 = vadd.f32 0.0, %v1025
      %v1027 = vpop.f32.mrf.mxu0
      %v1028 = vpop.f32.mrf.mxu0
      %v1029 = vadd.f32 0.0, %v1028
      %v1030 = vpop.f32.mrf.mxu0
      %1031 = vmatprep.mubr.bf16.mxu0 %v680
      %1032 = vmatmul.mubr.bf16.gmra.mxu0 %v679
      %v1033 = vpop.f32.mrf.mxu0
      %v1034 = vadd.f32 0.0, %v1033
      %v1035 = vpop.f32.mrf.mxu0
      %v1036 = vpop.f32.mrf.mxu0
      %v1037 = vadd.f32 0.0, %v1036
      %v1038 = vpop.f32.mrf.mxu0
      %1039 = vmatprep.mubr.bf16.mxu0 %v682
      %1040 = vmatmul.mubr.bf16.gmra.mxu0 %v681
      %v1041 = vpop.f32.mrf.mxu0
      %v1042 = vadd.f32 0.0, %v1041
      %v1043 = vpop.f32.mrf.mxu0
      %v1044 = vpop.f32.mrf.mxu0
      %v1045 = vadd.f32 0.0, %v1044
      %v1046 = vpop.f32.mrf.mxu0
      %1047 = vmatprep.mubr.bf16.mxu0 %v684
      %1048 = vmatmul.mubr.bf16.gmra.mxu0 %v683
      %v1049 = vpop.f32.mrf.mxu0
      %v1050 = vadd.f32 0.0, %v1049
      %v1051 = vpop.f32.mrf.mxu0
      %v1052 = vpop.f32.mrf.mxu0
      %v1053 = vadd.f32 0.0, %v1052
      %v1054 = vpop.f32.mrf.mxu0
      %1055 = vmatprep.mubr.bf16.mxu0 %v686
      %1056 = vmatmul.mubr.bf16.gmra.mxu0 %v685
      %v1057 = vpop.f32.mrf.mxu0
      %v1058 = vadd.f32 0.0, %v1057
      %v1059 = vpop.f32.mrf.mxu0
      %v1060 = vpop.f32.mrf.mxu0
      %v1061 = vadd.f32 0.0, %v1060
      %v1062 = vpop.f32.mrf.mxu0
      %1063 = vmatprep.mubr.bf16.mxu0 %v688
      %1064 = vmatmul.mubr.bf16.gmra.mxu0 %v687
      %v1065 = vpop.f32.mrf.mxu0
      %v1066 = vadd.f32 0.0, %v1065
      %v1067 = vpop.f32.mrf.mxu0
      %v1068 = vpop.f32.mrf.mxu0
      %v1069 = vadd.f32 0.0, %v1068
      %v1070 = vpop.f32.mrf.mxu0
      %1071 = vmatprep.mubr.bf16.mxu0 %v690
      %1072 = vmatmul.mubr.bf16.gmra.mxu0 %v689
      %v1073 = vpop.f32.mrf.mxu0
      %v1074 = vadd.f32 0.0, %v1073
      %v1075 = vpop.f32.mrf.mxu0
      %v1076 = vpop.f32.mrf.mxu0
      %v1077 = vadd.f32 0.0, %v1076
      %v1078 = vpop.f32.mrf.mxu0
      %1079 = vmatprep.mubr.bf16.mxu0 %v692
      %1080 = vmatmul.mubr.bf16.gmra.mxu0 %v691
      %v1081 = vpop.f32.mrf.mxu0
      %v1082 = vadd.f32 0.0, %v1081
      %v1083 = vpop.f32.mrf.mxu0
      %v1084 = vpop.f32.mrf.mxu0
      %v1085 = vadd.f32 0.0, %v1084
      %v1086 = vpop.f32.mrf.mxu0
      %1087 = vmatprep.mubr.bf16.mxu0 %v694
      %1088 = vmatmul.mubr.bf16.gmra.mxu0 %v693
      %v1089 = vpop.f32.mrf.mxu0
      %v1090 = vadd.f32 0.0, %v1089
      %v1091 = vpop.f32.mrf.mxu0
      %v1092 = vpop.f32.mrf.mxu0
      %v1093 = vadd.f32 0.0, %v1092
      %v1094 = vpop.f32.mrf.mxu0
      %1095 = vmatprep.mubr.bf16.mxu0 %v696
      %1096 = vmatmul.mubr.bf16.gmra.mxu0 %v695
      %v1097 = vpop.f32.mrf.mxu0
      %v1098 = vadd.f32 0.0, %v1097
      %v1099 = vpop.f32.mrf.mxu0
      %v1100 = vpop.f32.mrf.mxu0
      %v1101 = vadd.f32 0.0, %v1100
      %v1102 = vpop.f32.mrf.mxu0
      %1103 = vmatprep.mubr.bf16.mxu0 %v698
      %1104 = vmatmul.mubr.bf16.gmra.mxu0 %v697
      %v1105 = vpop.f32.mrf.mxu0
      %v1106 = vadd.f32 0.0, %v1105
      %v1107 = vpop.f32.mrf.mxu0
      %v1108 = vpop.f32.mrf.mxu0
      %v1109 = vadd.f32 0.0, %v1108
      %v1110 = vpop.f32.mrf.mxu0
      %1111 = vmatprep.mubr.bf16.mxu0 %v700
      %1112 = vmatmul.mubr.bf16.gmra.mxu0 %v699
      %v1113 = vpop.f32.mrf.mxu0
      %v1114 = vadd.f32 0.0, %v1113
      %v1115 = vpop.f32.mrf.mxu0
      %v1116 = vpop.f32.mrf.mxu0
      %v1117 = vadd.f32 0.0, %v1116
      %v1118 = vpop.f32.mrf.mxu0
      %1119 = vmatprep.mubr.bf16.mxu0 %v702
      %1120 = vmatmul.mubr.bf16.gmra.mxu0 %v701
      %v1121 = vpop.f32.mrf.mxu0
      %v1122 = vadd.f32 0.0, %v1121
      %v1123 = vpop.f32.mrf.mxu0
      %v1124 = vpop.f32.mrf.mxu0
      %v1125 = vadd.f32 0.0, %v1124
      %v1126 = vpop.f32.mrf.mxu0
      %1127 = vmatprep.mubr.bf16.mxu0 %v704
      %1128 = vmatmul.mubr.bf16.gmra.mxu0 %v703
      %v1129 = vpop.f32.mrf.mxu0
      %v1130 = vadd.f32 0.0, %v1129
      %v1131 = vpop.f32.mrf.mxu0
      %v1132 = vpop.f32.mrf.mxu0
      %v1133 = vadd.f32 0.0, %v1132
      %v1134 = vpop.f32.mrf.mxu0
      %1135 = vmatprep.mubr.bf16.mxu0 %v706
      %1136 = vmatmul.mubr.bf16.gmra.mxu0 %v705
      %v1137 = vpop.f32.mrf.mxu0
      %v1138 = vadd.f32 0.0, %v1137
      %v1139 = vpop.f32.mrf.mxu0
      %v1140 = vpop.f32.mrf.mxu0
      %v1141 = vadd.f32 0.0, %v1140
      %v1142 = vpop.f32.mrf.mxu0
      %1143 = vmatprep.mubr.bf16.mxu0 %v708
      %1144 = vmatmul.mubr.bf16.gmra.mxu0 %v707
      %v1145 = vpop.f32.mrf.mxu0
      %v1146 = vadd.f32 0.0, %v1145
      %v1147 = vpop.f32.mrf.mxu0
      %v1148 = vpop.f32.mrf.mxu0
      %v1149 = vadd.f32 0.0, %v1148
      %v1150 = vpop.f32.mrf.mxu0
      %1151 = vmatprep.mubr.bf16.mxu0 %v710
      %1152 = vmatmul.mubr.bf16.gmra.mxu0 %v709
      %v1153 = vpop.f32.mrf.mxu0
      %v1154 = vadd.f32 0.0, %v1153
      %v1155 = vpop.f32.mrf.mxu0
      %v1156 = vpop.f32.mrf.mxu0
      %v1157 = vadd.f32 0.0, %v1156
      %v1158 = vpop.f32.mrf.mxu0
      %1159 = vdwg.mxu0
      %v1160 = vadd.f32 %v295, %v906
      %v1161 = vadd.f32 %v296, %v909
      %v1162 = vadd.f32 %v297, %v914
      %v1163 = vadd.f32 %v298, %v917
      %v1164 = vadd.f32 %v299, %v922
      %v1165 = vadd.f32 %v300, %v925
      %v1166 = vadd.f32 %v301, %v930
      %v1167 = vadd.f32 %v302, %v933
      %v1168 = vadd.f32 %v303, %v938
      %v1169 = vadd.f32 %v304, %v941
      %v1170 = vadd.f32 %v305, %v946
      %v1171 = vadd.f32 %v306, %v949
      %v1172 = vadd.f32 %v307, %v954
      %v1173 = vadd.f32 %v308, %v957
      %v1174 = vadd.f32 %v309, %v962
      %v1175 = vadd.f32 %v310, %v965
      %v1176 = vadd.f32 %v311, %v970
      %v1177 = vadd.f32 %v312, %v973
      %v1178 = vadd.f32 %v313, %v978
      %v1179 = vadd.f32 %v314, %v981
      %v1180 = vadd.f32 %v315, %v986
      %v1181 = vadd.f32 %v316, %v989
      %v1182 = vadd.f32 %v317, %v994
      %v1183 = vadd.f32 %v318, %v997
      %v1184 = vadd.f32 %v319, %v1002
      %v1185 = vadd.f32 %v320, %v1005
      %v1186 = vadd.f32 %v321, %v1010
      %v1187 = vadd.f32 %v322, %v1013
      %v1188 = vadd.f32 %v323, %v1018
      %v1189 = vadd.f32 %v324, %v1021
      %v1190 = vadd.f32 %v325, %v1026
      %v1191 = vadd.f32 %v326, %v1029
      %v1192 = vadd.f32 %v327, %v1034
      %v1193 = vadd.f32 %v328, %v1037
      %v1194 = vadd.f32 %v329, %v1042
      %v1195 = vadd.f32 %v330, %v1045
      %v1196 = vadd.f32 %v331, %v1050
      %v1197 = vadd.f32 %v332, %v1053
      %v1198 = vadd.f32 %v333, %v1058
      %v1199 = vadd.f32 %v334, %v1061
      %v1200 = vadd.f32 %v335, %v1066
      %v1201 = vadd.f32 %v336, %v1069
      %v1202 = vadd.f32 %v337, %v1074
      %v1203 = vadd.f32 %v338, %v1077
      %v1204 = vadd.f32 %v339, %v1082
      %v1205 = vadd.f32 %v340, %v1085
      %v1206 = vadd.f32 %v341, %v1090
      %v1207 = vadd.f32 %v342, %v1093
      %v1208 = vadd.f32 %v343, %v1098
      %v1209 = vadd.f32 %v344, %v1101
      %v1210 = vadd.f32 %v345, %v1106
      %v1211 = vadd.f32 %v346, %v1109
      %v1212 = vadd.f32 %v347, %v1114
      %v1213 = vadd.f32 %v348, %v1117
      %v1214 = vadd.f32 %v349, %v1122
      %v1215 = vadd.f32 %v350, %v1125
      %v1216 = vadd.f32 %v351, %v1130
      %v1217 = vadd.f32 %v352, %v1133
      %v1218 = vadd.f32 %v353, %v1138
      %v1219 = vadd.f32 %v354, %v1141
      %v1220 = vadd.f32 %v355, %v1146
      %v1221 = vadd.f32 %v356, %v1149
      %v1222 = vadd.f32 %v357, %v1154
      %v1223 = vadd.f32 %v358, %v1157
      %1224 = vst [vmem:[#allocation2] sm:$0xff] %v1160
      %1225 = vst [vmem:[#allocation2 + $0x8] sm:$0xff] %v1161
      %1226 = vst [vmem:[#allocation2 + $0x10] sm:$0xff] %v1162
      %1227 = vst [vmem:[#allocation2 + $0x18] sm:$0xff] %v1163
      %1228 = vst [vmem:[#allocation2 + $0x20] sm:$0xff] %v1164
      %1229 = vst [vmem:[#allocation2 + $0x28] sm:$0xff] %v1165
      %1230 = vst [vmem:[#allocation2 + $0x30] sm:$0xff] %v1166
      %1231 = vst [vmem:[#allocation2 + $0x38] sm:$0xff] %v1167
      %1232 = vst [vmem:[#allocation2 + $0x40] sm:$0xff] %v1168
      %1233 = vst [vmem:[#allocation2 + $0x48] sm:$0xff] %v1169
      %1234 = vst [vmem:[#allocation2 + $0x50] sm:$0xff] %v1170
      %1235 = vst [vmem:[#allocation2 + $0x58] sm:$0xff] %v1171
      %1236 = vst [vmem:[#allocation2 + $0x60] sm:$0xff] %v1172
      %1237 = vst [vmem:[#allocation2 + $0x68] sm:$0xff] %v1173
      %1238 = vst [vmem:[#allocation2 + $0x70] sm:$0xff] %v1174
      %1239 = vst [vmem:[#allocation2 + $0x78] sm:$0xff] %v1175
      %1240 = vst [vmem:[#allocation2 + $0x80] sm:$0xff] %v1176
      %1241 = vst [vmem:[#allocation2 + $0x88] sm:$0xff] %v1177
      %1242 = vst [vmem:[#allocation2 + $0x90] sm:$0xff] %v1178
      %1243 = vst [vmem:[#allocation2 + $0x98] sm:$0xff] %v1179
      %1244 = vst [vmem:[#allocation2 + $0xa0] sm:$0xff] %v1180
      %1245 = vst [vmem:[#allocation2 + $0xa8] sm:$0xff] %v1181
      %1246 = vst [vmem:[#allocation2 + $0xb0] sm:$0xff] %v1182
      %1247 = vst [vmem:[#allocation2 + $0xb8] sm:$0xff] %v1183
      %1248 = vst [vmem:[#allocation2 + $0xc0] sm:$0xff] %v1184
      %1249 = vst [vmem:[#allocation2 + $0xc8] sm:$0xff] %v1185
      %1250 = vst [vmem:[#allocation2 + $0xd0] sm:$0xff] %v1186
      %1251 = vst [vmem:[#allocation2 + $0xd8] sm:$0xff] %v1187
      %1252 = vst [vmem:[#allocation2 + $0xe0] sm:$0xff] %v1188
      %1253 = vst [vmem:[#allocation2 + $0xe8] sm:$0xff] %v1189
      %1254 = vst [vmem:[#allocation2 + $0xf0] sm:$0xff] %v1190
      %1255 = vst [vmem:[#allocation2 + $0xf8] sm:$0xff] %v1191
      %1256 = vst [vmem:[#allocation2 + $0x100] sm:$0xff] %v1192
      %1257 = vst [vmem:[#allocation2 + $0x108] sm:$0xff] %v1193
      %1258 = vst [vmem:[#allocation2 + $0x110] sm:$0xff] %v1194
      %1259 = vst [vmem:[#allocation2 + $0x118] sm:$0xff] %v1195
      %1260 = vst [vmem:[#allocation2 + $0x120] sm:$0xff] %v1196
      %1261 = vst [vmem:[#allocation2 + $0x128] sm:$0xff] %v1197
      %1262 = vst [vmem:[#allocation2 + $0x130] sm:$0xff] %v1198
      %1263 = vst [vmem:[#allocation2 + $0x138] sm:$0xff] %v1199
      %1264 = vst [vmem:[#allocation2 + $0x140] sm:$0xff] %v1200
      %1265 = vst [vmem:[#allocation2 + $0x148] sm:$0xff] %v1201
      %1266 = vst [vmem:[#allocation2 + $0x150] sm:$0xff] %v1202
      %1267 = vst [vmem:[#allocation2 + $0x158] sm:$0xff] %v1203
      %1268 = vst [vmem:[#allocation2 + $0x160] sm:$0xff] %v1204
      %1269 = vst [vmem:[#allocation2 + $0x168] sm:$0xff] %v1205
      %1270 = vst [vmem:[#allocation2 + $0x170] sm:$0xff] %v1206
      %1271 = vst [vmem:[#allocation2 + $0x178] sm:$0xff] %v1207
      %1272 = vst [vmem:[#allocation2 + $0x180] sm:$0xff] %v1208
      %1273 = vst [vmem:[#allocation2 + $0x188] sm:$0xff] %v1209
      %1274 = vst [vmem:[#allocation2 + $0x190] sm:$0xff] %v1210
      %1275 = vst [vmem:[#allocation2 + $0x198] sm:$0xff] %v1211
      %1276 = vst [vmem:[#allocation2 + $0x1a0] sm:$0xff] %v1212
      %1277 = vst [vmem:[#allocation2 + $0x1a8] sm:$0xff] %v1213
      %1278 = vst [vmem:[#allocation2 + $0x1b0] sm:$0xff] %v1214
      %1279 = vst [vmem:[#allocation2 + $0x1b8] sm:$0xff] %v1215
      %1280 = vst [vmem:[#allocation2 + $0x1c0] sm:$0xff] %v1216
      %1281 = vst [vmem:[#allocation2 + $0x1c8] sm:$0xff] %v1217
      %1282 = vst [vmem:[#allocation2 + $0x1d0] sm:$0xff] %v1218
      %1283 = vst [vmem:[#allocation2 + $0x1d8] sm:$0xff] %v1219
      %1284 = vst [vmem:[#allocation2 + $0x1e0] sm:$0xff] %v1220
      %1285 = vst [vmem:[#allocation2 + $0x1e8] sm:$0xff] %v1221
      %1286 = vst [vmem:[#allocation2 + $0x1f0] sm:$0xff] %v1222
      %1287 = vst [vmem:[#allocation2 + $0x1f8] sm:$0xff] %v1223
      // Predicated region
      $region33: #{matmul_fused.1} parent=27 // pred_check
        %p1288 = pneg %p227
      $region34: #{matmul_fused.1} parent=27 // pred_check_branch
        %1290 = sbr.rel (%p1288) target = $region36
      $region35: #{matmul_fused.1} parent=27 // pred_region
        %v1291 = vld [vmem:[#allocation2] sm:$0xff]
        %v1292 = vld [vmem:[#allocation2 + $0x8] sm:$0xff]
        %v1293 = vld [vmem:[#allocation2 + $0x10] sm:$0xff]
        %v1294 = vld [vmem:[#allocation2 + $0x18] sm:$0xff]
        %v1295 = vld [vmem:[#allocation2 + $0x20] sm:$0xff]
        %v1296 = vld [vmem:[#allocation2 + $0x28] sm:$0xff]
        %v1297 = vld [vmem:[#allocation2 + $0x30] sm:$0xff]
        %v1298 = vld [vmem:[#allocation2 + $0x38] sm:$0xff]
        %v1299 = vld [vmem:[#allocation2 + $0x40] sm:$0xff]
        %v1300 = vld [vmem:[#allocation2 + $0x48] sm:$0xff]
        %v1301 = vld [vmem:[#allocation2 + $0x50] sm:$0xff]
        %v1302 = vld [vmem:[#allocation2 + $0x58] sm:$0xff]
        %v1303 = vld [vmem:[#allocation2 + $0x60] sm:$0xff]
        %v1304 = vld [vmem:[#allocation2 + $0x68] sm:$0xff]
        %v1305 = vld [vmem:[#allocation2 + $0x70] sm:$0xff]
        %v1306 = vld [vmem:[#allocation2 + $0x78] sm:$0xff]
        %v1307 = vld [vmem:[#allocation2 + $0x80] sm:$0xff]
        %v1308 = vld [vmem:[#allocation2 + $0x88] sm:$0xff]
        %v1309 = vld [vmem:[#allocation2 + $0x90] sm:$0xff]
        %v1310 = vld [vmem:[#allocation2 + $0x98] sm:$0xff]
        %v1311 = vld [vmem:[#allocation2 + $0xa0] sm:$0xff]
        %v1312 = vld [vmem:[#allocation2 + $0xa8] sm:$0xff]
        %v1313 = vld [vmem:[#allocation2 + $0xb0] sm:$0xff]
        %v1314 = vld [vmem:[#allocation2 + $0xb8] sm:$0xff]
        %v1315 = vld [vmem:[#allocation2 + $0xc0] sm:$0xff]
        %v1316 = vld [vmem:[#allocation2 + $0xc8] sm:$0xff]
        %v1317 = vld [vmem:[#allocation2 + $0xd0] sm:$0xff]
        %v1318 = vld [vmem:[#allocation2 + $0xd8] sm:$0xff]
        %v1319 = vld [vmem:[#allocation2 + $0xe0] sm:$0xff]
        %v1320 = vld [vmem:[#allocation2 + $0xe8] sm:$0xff]
        %v1321 = vld [vmem:[#allocation2 + $0xf0] sm:$0xff]
        %v1322 = vld [vmem:[#allocation2 + $0xf8] sm:$0xff]
        %v1323 = vld [vmem:[#allocation2 + $0x100] sm:$0xff]
        %v1324 = vld [vmem:[#allocation2 + $0x108] sm:$0xff]
        %v1325 = vld [vmem:[#allocation2 + $0x110] sm:$0xff]
        %v1326 = vld [vmem:[#allocation2 + $0x118] sm:$0xff]
        %v1327 = vld [vmem:[#allocation2 + $0x120] sm:$0xff]
        %v1328 = vld [vmem:[#allocation2 + $0x128] sm:$0xff]
        %v1329 = vld [vmem:[#allocation2 + $0x130] sm:$0xff]
        %v1330 = vld [vmem:[#allocation2 + $0x138] sm:$0xff]
        %v1331 = vld [vmem:[#allocation2 + $0x140] sm:$0xff]
        %v1332 = vld [vmem:[#allocation2 + $0x148] sm:$0xff]
        %v1333 = vld [vmem:[#allocation2 + $0x150] sm:$0xff]
        %v1334 = vld [vmem:[#allocation2 + $0x158] sm:$0xff]
        %v1335 = vld [vmem:[#allocation2 + $0x160] sm:$0xff]
        %v1336 = vld [vmem:[#allocation2 + $0x168] sm:$0xff]
        %v1337 = vld [vmem:[#allocation2 + $0x170] sm:$0xff]
        %v1338 = vld [vmem:[#allocation2 + $0x178] sm:$0xff]
        %v1339 = vld [vmem:[#allocation2 + $0x180] sm:$0xff]
        %v1340 = vld [vmem:[#allocation2 + $0x188] sm:$0xff]
        %v1341 = vld [vmem:[#allocation2 + $0x190] sm:$0xff]
        %v1342 = vld [vmem:[#allocation2 + $0x198] sm:$0xff]
        %v1343 = vld [vmem:[#allocation2 + $0x1a0] sm:$0xff]
        %v1344 = vld [vmem:[#allocation2 + $0x1a8] sm:$0xff]
        %v1345 = vld [vmem:[#allocation2 + $0x1b0] sm:$0xff]
        %v1346 = vld [vmem:[#allocation2 + $0x1b8] sm:$0xff]
        %v1347 = vld [vmem:[#allocation2 + $0x1c0] sm:$0xff]
        %v1348 = vld [vmem:[#allocation2 + $0x1c8] sm:$0xff]
        %v1349 = vld [vmem:[#allocation2 + $0x1d0] sm:$0xff]
        %v1350 = vld [vmem:[#allocation2 + $0x1d8] sm:$0xff]
        %v1351 = vld [vmem:[#allocation2 + $0x1e0] sm:$0xff]
        %v1352 = vld [vmem:[#allocation2 + $0x1e8] sm:$0xff]
        %v1353 = vld [vmem:[#allocation2 + $0x1f0] sm:$0xff]
        %v1354 = vld [vmem:[#allocation2 + $0x1f8] sm:$0xff]
        %v1355 = vpack.c.bf16 %v1292, %v1291
        %v1356 = vpack.c.bf16 %v1294, %v1293
        %v1357 = vpack.c.bf16 %v1296, %v1295
        %v1358 = vpack.c.bf16 %v1298, %v1297
        %v1359 = vpack.c.bf16 %v1300, %v1299
        %v1360 = vpack.c.bf16 %v1302, %v1301
        %v1361 = vpack.c.bf16 %v1304, %v1303
        %v1362 = vpack.c.bf16 %v1306, %v1305
        %v1363 = vpack.c.bf16 %v1308, %v1307
        %v1364 = vpack.c.bf16 %v1310, %v1309
        %v1365 = vpack.c.bf16 %v1312, %v1311
        %v1366 = vpack.c.bf16 %v1314, %v1313
        %v1367 = vpack.c.bf16 %v1316, %v1315
        %v1368 = vpack.c.bf16 %v1318, %v1317
        %v1369 = vpack.c.bf16 %v1320, %v1319
        %v1370 = vpack.c.bf16 %v1322, %v1321
        %v1371 = vpack.c.bf16 %v1324, %v1323
        %v1372 = vpack.c.bf16 %v1326, %v1325
        %v1373 = vpack.c.bf16 %v1328, %v1327
        %v1374 = vpack.c.bf16 %v1330, %v1329
        %v1375 = vpack.c.bf16 %v1332, %v1331
        %v1376 = vpack.c.bf16 %v1334, %v1333
        %v1377 = vpack.c.bf16 %v1336, %v1335
        %v1378 = vpack.c.bf16 %v1338, %v1337
        %v1379 = vpack.c.bf16 %v1340, %v1339
        %v1380 = vpack.c.bf16 %v1342, %v1341
        %v1381 = vpack.c.bf16 %v1344, %v1343
        %v1382 = vpack.c.bf16 %v1346, %v1345
        %v1383 = vpack.c.bf16 %v1348, %v1347
        %v1384 = vpack.c.bf16 %v1350, %v1349
        %v1385 = vpack.c.bf16 %v1352, %v1351
        %v1386 = vpack.c.bf16 %v1354, %v1353
        %v1419 = vunpack.c.l.b16 %v1355
        %v1420 = vunpack.c.h.b16 %v1355
        %v1421 = vunpack.c.l.b16 %v1356
        %v1422 = vunpack.c.h.b16 %v1356
        %v1423 = vunpack.c.l.b16 %v1357
        %v1424 = vunpack.c.h.b16 %v1357
        %v1425 = vunpack.c.l.b16 %v1358
        %v1426 = vunpack.c.h.b16 %v1358
        %v1427 = vunpack.c.l.b16 %v1359
        %v1428 = vunpack.c.h.b16 %v1359
        %v1429 = vunpack.c.l.b16 %v1360
        %v1430 = vunpack.c.h.b16 %v1360
        %v1431 = vunpack.c.l.b16 %v1361
        %v1432 = vunpack.c.h.b16 %v1361
        %v1433 = vunpack.c.l.b16 %v1362
        %v1434 = vunpack.c.h.b16 %v1362
        %v1435 = vunpack.c.l.b16 %v1363
        %v1436 = vunpack.c.h.b16 %v1363
        %v1437 = vunpack.c.l.b16 %v1364
        %v1438 = vunpack.c.h.b16 %v1364
        %v1439 = vunpack.c.l.b16 %v1365
        %v1440 = vunpack.c.h.b16 %v1365
        %v1441 = vunpack.c.l.b16 %v1366
        %v1442 = vunpack.c.h.b16 %v1366
        %v1443 = vunpack.c.l.b16 %v1367
        %v1444 = vunpack.c.h.b16 %v1367
        %v1445 = vunpack.c.l.b16 %v1368
        %v1446 = vunpack.c.h.b16 %v1368
        %v1447 = vunpack.c.l.b16 %v1369
        %v1448 = vunpack.c.h.b16 %v1369
        %v1449 = vunpack.c.l.b16 %v1370
        %v1450 = vunpack.c.h.b16 %v1370
        %v1451 = vunpack.c.l.b16 %v1371
        %v1452 = vunpack.c.h.b16 %v1371
        %v1453 = vunpack.c.l.b16 %v1372
        %v1454 = vunpack.c.h.b16 %v1372
        %v1455 = vunpack.c.l.b16 %v1373
        %v1456 = vunpack.c.h.b16 %v1373
        %v1457 = vunpack.c.l.b16 %v1374
        %v1458 = vunpack.c.h.b16 %v1374
        %v1459 = vunpack.c.l.b16 %v1375
        %v1460 = vunpack.c.h.b16 %v1375
        %v1461 = vunpack.c.l.b16 %v1376
        %v1462 = vunpack.c.h.b16 %v1376
        %v1463 = vunpack.c.l.b16 %v1377
        %v1464 = vunpack.c.h.b16 %v1377
        %v1465 = vunpack.c.l.b16 %v1378
        %v1466 = vunpack.c.h.b16 %v1378
        %v1467 = vunpack.c.l.b16 %v1379
        %v1468 = vunpack.c.h.b16 %v1379
        %v1469 = vunpack.c.l.b16 %v1380
        %v1470 = vunpack.c.h.b16 %v1380
        %v1471 = vunpack.c.l.b16 %v1381
        %v1472 = vunpack.c.h.b16 %v1381
        %v1473 = vunpack.c.l.b16 %v1382
        %v1474 = vunpack.c.h.b16 %v1382
        %v1475 = vunpack.c.l.b16 %v1383
        %v1476 = vunpack.c.h.b16 %v1383
        %v1477 = vunpack.c.l.b16 %v1384
        %v1478 = vunpack.c.h.b16 %v1384
        %v1479 = vunpack.c.l.b16 %v1385
        %v1480 = vunpack.c.h.b16 %v1385
        %v1481 = vunpack.c.l.b16 %v1386
        %v1482 = vunpack.c.h.b16 %v1386
        %v1483 = vpack.c.b16 %v1419, %v1419
        %v1484 = vpack.c.b16 %v1420, %v1420
        %v1485 = vpack.c.b16 %v1421, %v1421
        %v1486 = vpack.c.b16 %v1422, %v1422
        %v1487 = vpack.c.b16 %v1423, %v1423
        %v1488 = vpack.c.b16 %v1424, %v1424
        %v1489 = vpack.c.b16 %v1425, %v1425
        %v1490 = vpack.c.b16 %v1426, %v1426
        %v1491 = vpack.c.b16 %v1427, %v1427
        %v1492 = vpack.c.b16 %v1428, %v1428
        %v1493 = vpack.c.b16 %v1429, %v1429
        %v1494 = vpack.c.b16 %v1430, %v1430
        %v1495 = vpack.c.b16 %v1431, %v1431
        %v1496 = vpack.c.b16 %v1432, %v1432
        %v1497 = vpack.c.b16 %v1433, %v1433
        %v1498 = vpack.c.b16 %v1434, %v1434
        %v1499 = vpack.c.b16 %v1435, %v1435
        %v1500 = vpack.c.b16 %v1436, %v1436
        %v1501 = vpack.c.b16 %v1437, %v1437
        %v1502 = vpack.c.b16 %v1438, %v1438
        %v1503 = vpack.c.b16 %v1439, %v1439
        %v1504 = vpack.c.b16 %v1440, %v1440
        %v1505 = vpack.c.b16 %v1441, %v1441
        %v1506 = vpack.c.b16 %v1442, %v1442
        %v1507 = vpack.c.b16 %v1443, %v1443
        %v1508 = vpack.c.b16 %v1444, %v1444
        %v1509 = vpack.c.b16 %v1445, %v1445
        %v1510 = vpack.c.b16 %v1446, %v1446
        %v1511 = vpack.c.b16 %v1447, %v1447
        %v1512 = vpack.c.b16 %v1448, %v1448
        %v1513 = vpack.c.b16 %v1449, %v1449
        %v1514 = vpack.c.b16 %v1450, %v1450
        %v1515 = vpack.c.b16 %v1451, %v1451
        %v1516 = vpack.c.b16 %v1452, %v1452
        %v1517 = vpack.c.b16 %v1453, %v1453
        %v1518 = vpack.c.b16 %v1454, %v1454
        %v1519 = vpack.c.b16 %v1455, %v1455
        %v1520 = vpack.c.b16 %v1456, %v1456
        %v1521 = vpack.c.b16 %v1457, %v1457
        %v1522 = vpack.c.b16 %v1458, %v1458
        %v1523 = vpack.c.b16 %v1459, %v1459
        %v1524 = vpack.c.b16 %v1460, %v1460
        %v1525 = vpack.c.b16 %v1461, %v1461
        %v1526 = vpack.c.b16 %v1462, %v1462
        %v1527 = vpack.c.b16 %v1463, %v1463
        %v1528 = vpack.c.b16 %v1464, %v1464
        %v1529 = vpack.c.b16 %v1465, %v1465
        %v1530 = vpack.c.b16 %v1466, %v1466
        %v1531 = vpack.c.b16 %v1467, %v1467
        %v1532 = vpack.c.b16 %v1468, %v1468
        %v1533 = vpack.c.b16 %v1469, %v1469
        %v1534 = vpack.c.b16 %v1470, %v1470
        %v1535 = vpack.c.b16 %v1471, %v1471
        %v1536 = vpack.c.b16 %v1472, %v1472
        %v1537 = vpack.c.b16 %v1473, %v1473
        %v1538 = vpack.c.b16 %v1474, %v1474
        %v1539 = vpack.c.b16 %v1475, %v1475
        %v1540 = vpack.c.b16 %v1476, %v1476
        %v1541 = vpack.c.b16 %v1477, %v1477
        %v1542 = vpack.c.b16 %v1478, %v1478
        %v1543 = vpack.c.b16 %v1479, %v1479
        %v1544 = vpack.c.b16 %v1480, %v1480
        %v1545 = vpack.c.b16 %v1481, %v1481
        %v1546 = vpack.c.b16 %v1482, %v1482
        %1611 = vst [vmem:[%s224] sm:$0xf] %v1483
        %1612 = vst [vmem:[%s224 + $0x4] sm:$0xf] %v1484
        %1613 = vst [vmem:[%s224 + $0x8] sm:$0xf] %v1485
        %1614 = vst [vmem:[%s224 + $0xc] sm:$0xf] %v1486
        %1615 = vst [vmem:[%s224 + $0x10] sm:$0xf] %v1487
        %1616 = vst [vmem:[%s224 + $0x14] sm:$0xf] %v1488
        %1617 = vst [vmem:[%s224 + $0x18] sm:$0xf] %v1489
        %1618 = vst [vmem:[%s224 + $0x1c] sm:$0xf] %v1490
        %1619 = vst [vmem:[%s224 + $0x20] sm:$0xf] %v1491
        %1620 = vst [vmem:[%s224 + $0x24] sm:$0xf] %v1492
        %1621 = vst [vmem:[%s224 + $0x28] sm:$0xf] %v1493
        %1622 = vst [vmem:[%s224 + $0x2c] sm:$0xf] %v1494
        %1623 = vst [vmem:[%s224 + $0x30] sm:$0xf] %v1495
        %1624 = vst [vmem:[%s224 + $0x34] sm:$0xf] %v1496
        %1625 = vst [vmem:[%s224 + $0x38] sm:$0xf] %v1497
        %1626 = vst [vmem:[%s224 + $0x3c] sm:$0xf] %v1498
        %1627 = vst [vmem:[%s224 + $0x40] sm:$0xf] %v1499
        %1628 = vst [vmem:[%s224 + $0x44] sm:$0xf] %v1500
        %1629 = vst [vmem:[%s224 + $0x48] sm:$0xf] %v1501
        %1630 = vst [vmem:[%s224 + $0x4c] sm:$0xf] %v1502
        %1631 = vst [vmem:[%s224 + $0x50] sm:$0xf] %v1503
        %1632 = vst [vmem:[%s224 + $0x54] sm:$0xf] %v1504
        %1633 = vst [vmem:[%s224 + $0x58] sm:$0xf] %v1505
        %1634 = vst [vmem:[%s224 + $0x5c] sm:$0xf] %v1506
        %1635 = vst [vmem:[%s224 + $0x60] sm:$0xf] %v1507
        %1636 = vst [vmem:[%s224 + $0x64] sm:$0xf] %v1508
        %1637 = vst [vmem:[%s224 + $0x68] sm:$0xf] %v1509
        %1638 = vst [vmem:[%s224 + $0x6c] sm:$0xf] %v1510
        %1639 = vst [vmem:[%s224 + $0x70] sm:$0xf] %v1511
        %1640 = vst [vmem:[%s224 + $0x74] sm:$0xf] %v1512
        %1641 = vst [vmem:[%s224 + $0x78] sm:$0xf] %v1513
        %1642 = vst [vmem:[%s224 + $0x7c] sm:$0xf] %v1514
        %1643 = vst [vmem:[%s224 + $0x80] sm:$0xf] %v1515
        %1644 = vst [vmem:[%s224 + $0x84] sm:$0xf] %v1516
        %1645 = vst [vmem:[%s224 + $0x88] sm:$0xf] %v1517
        %1646 = vst [vmem:[%s224 + $0x8c] sm:$0xf] %v1518
        %1647 = vst [vmem:[%s224 + $0x90] sm:$0xf] %v1519
        %1648 = vst [vmem:[%s224 + $0x94] sm:$0xf] %v1520
        %1649 = vst [vmem:[%s224 + $0x98] sm:$0xf] %v1521
        %1650 = vst [vmem:[%s224 + $0x9c] sm:$0xf] %v1522
        %1651 = vst [vmem:[%s224 + $0xa0] sm:$0xf] %v1523
        %1652 = vst [vmem:[%s224 + $0xa4] sm:$0xf] %v1524
        %1653 = vst [vmem:[%s224 + $0xa8] sm:$0xf] %v1525
        %1654 = vst [vmem:[%s224 + $0xac] sm:$0xf] %v1526
        %1655 = vst [vmem:[%s224 + $0xb0] sm:$0xf] %v1527
        %1656 = vst [vmem:[%s224 + $0xb4] sm:$0xf] %v1528
        %1657 = vst [vmem:[%s224 + $0xb8] sm:$0xf] %v1529
        %1658 = vst [vmem:[%s224 + $0xbc] sm:$0xf] %v1530
        %1659 = vst [vmem:[%s224 + $0xc0] sm:$0xf] %v1531
        %1660 = vst [vmem:[%s224 + $0xc4] sm:$0xf] %v1532
        %1661 = vst [vmem:[%s224 + $0xc8] sm:$0xf] %v1533
        %1662 = vst [vmem:[%s224 + $0xcc] sm:$0xf] %v1534
        %1663 = vst [vmem:[%s224 + $0xd0] sm:$0xf] %v1535
        %1664 = vst [vmem:[%s224 + $0xd4] sm:$0xf] %v1536
        %1665 = vst [vmem:[%s224 + $0xd8] sm:$0xf] %v1537
        %1666 = vst [vmem:[%s224 + $0xdc] sm:$0xf] %v1538
        %1667 = vst [vmem:[%s224 + $0xe0] sm:$0xf] %v1539
        %1668 = vst [vmem:[%s224 + $0xe4] sm:$0xf] %v1540
        %1669 = vst [vmem:[%s224 + $0xe8] sm:$0xf] %v1541
        %1670 = vst [vmem:[%s224 + $0xec] sm:$0xf] %v1542
        %1671 = vst [vmem:[%s224 + $0xf0] sm:$0xf] %v1543
        %1672 = vst [vmem:[%s224 + $0xf4] sm:$0xf] %v1544
        %1673 = vst [vmem:[%s224 + $0xf8] sm:$0xf] %v1545
        %1674 = vst [vmem:[%s224 + $0xfc] sm:$0xf] %v1546
      $region36: #{matmul_fused.1} parent=27 // pred_fallthru
        _
      %s1675 = smul.u32 64, %s18
      %p1676 = scmp.lt.s32.totalorder %s1675, 3135
      %s1677 = scalar_select %p1676, %s1675, 3135
      %p1678 = scmp.lt.s32.totalorder %s19, 0
      %s1679 = scalar_select %p1678, %s19, 0
      %s1680 = sadd.s32 %s1679, %s1677
      %s1681 = smul.addr %s1680, 4
      %s1682 = scalar_lea.vmem %s2, %s1681
      // Predicated region
      $region37: #{matmul_fused.1} parent=27 // pred_check
        %p1683 = pneg %p108
      $region38: #{matmul_fused.1} parent=27 // pred_check_branch
        %1685 = sbr.rel (%p1683) target = $region40
      $region39: #{matmul_fused.1} parent=27 // pred_region
        %s1686 = smul.u32 64, %s18
      $region40: #{matmul_fused.1} parent=27 // pred_fallthru
        _
    $region28: #{matmul_fused.1} parent=5 // pred_fallthru
      _
    %p1687 = scmp.le.s32.totalorder 2, %s8
    // Predicated region
    $region41: #{matmul_fused.1} parent=5 // pred_check
      %p1688 = pneg %p1687
    $region42: #{matmul_fused.1} parent=5 // pred_check_branch
      %1690 = sbr.rel (%p1688) target = $region44
    $region43: #{matmul_fused.1} parent=5 // pred_region
      %s1691 = ssub.s32 %s8, 2
      // Predicated region
      $region45: #{matmul_fused.1} parent=43 // pred_check
        %p1692 = pneg %p114
      $region46: #{matmul_fused.1} parent=43 // pred_check_branch
        %1694 = sbr.rel (%p1692) target = $region48
      $region47: #{matmul_fused.1} parent=43 // pred_region
        %s1695 = smul.u32 64, %s21
        %p1696 = scmp.lt.s32.totalorder %s1695, 3135
        %s1697 = scalar_select %p1696, %s1695, 3135
        %p1698 = scmp.lt.s32.totalorder %s22, 0
        %s1699 = scalar_select %p1698, %s22, 0
        %s1700 = sadd.s32 %s1699, %s1697
        %s1701 = smul.addr %s1700, 4
        %s1702 = scalar_lea.vmem %s2, %s1701
      $region48: #{matmul_fused.1} parent=43 // pred_fallthru
        _
    $region44: #{matmul_fused.1} parent=5 // pred_fallthru
      _
  $region6: #{matmul_fused.1} parent=0 // loop_footer
    %s12 = sadd.s32 1, %s8
  $region7: #{matmul_fused.1} parent=0 // loop_footer_branch
    %7 = sbr.rel target = $region3
  $region8: #{matmul_fused.1} parent=0 // loop_exit
    _

</llo_original>
